<compile_context>
chip_gen: v6e
topology: v6e:2x2x1
jax: 0.10.0
libtpu: 0.0.40
codegen_flags: <defaults>
</compile_context>

<pallas_src>
import functools

import jax
import jax.numpy as jnp
from jax.experimental import pallas as pl
from jax.experimental.pallas import tpu as pltpu


# ----------------------------------------------------------------------------
# Host-side (one-time) constant construction.
# ----------------------------------------------------------------------------
def _bilinear_matrix(n_in, n_out):
    """(n_out, n_in) interpolation matrix: mode='bilinear', align_corners=True."""
    i = jnp.arange(n_out, dtype=jnp.float32)
    src = i * (n_in - 1) / (n_out - 1)
    i0 = jnp.clip(jnp.floor(src).astype(jnp.int32), 0, n_in - 1)
    i1 = jnp.clip(i0 + 1, 0, n_in - 1)
    frac = src - i0.astype(jnp.float32)
    cols = jnp.arange(n_in)
    return ((cols[None, :] == i0[:, None]).astype(jnp.float32) * (1.0 - frac)[:, None]
            + (cols[None, :] == i1[:, None]).astype(jnp.float32) * frac[:, None])


def _conv1d_matrix(n, taps):
    """(n, n) banded M: (M @ v)[i] = taps[0]*v[i-1] + taps[1]*v[i] + taps[2]*v[i+1], zero pad."""
    return (taps[0] * jnp.eye(n, k=-1, dtype=jnp.float32)
            + taps[1] * jnp.eye(n, k=0, dtype=jnp.float32)
            + taps[2] * jnp.eye(n, k=1, dtype=jnp.float32))


def _pick_strip(total, target, multiple):
    """Largest divisor of `total` that is a multiple of `multiple` and <= target."""
    t = min(total, target)
    t -= t % multiple
    while t >= multiple:
        if total % t == 0:
            return t
        t -= multiple
    return total  # fall back to the full extent (always a legal block)


# ----------------------------------------------------------------------------
# Fused strip kernel: 1x1 classifier + fused W-pass + per-class H-pass + sqrt.
# ----------------------------------------------------------------------------
def _strip_kernel(w_ref, x_ref, bw_ref, bxh_ref, byh_ref, o_ref, *, cin, nc):
    c = pl.program_id(1)                                   # class index

    # 1x1 classifier stand-in: per-pixel contraction from SMEM scalars.
    xa = x_ref[0]                                          # (Cin, H, W) f32
    logits = xa[0] * w_ref[0 * nc + c]
    for ci in range(1, cin):
        logits = logits + xa[ci] * w_ref[ci * nc + c]
    logits = logits + w_ref[cin * nc + c]                  # bias
    logits = logits.astype(jnp.bfloat16)

    # Fused W-pass: single dot against [Bx_w^T strip | By_w^T strip].
    txy = jnp.dot(logits, bw_ref[...],
                  preferred_element_type=jnp.float32)      # (H, 2*TC) f32
    tc = txy.shape[1] // 2
    tx = txy[:, :tc].astype(jnp.bfloat16)
    ty = txy[:, tc:].astype(jnp.bfloat16)

    # H-pass for this row strip: lane-dense (M=TR mult of 8, N=TC mult of 128).
    sx = jnp.dot(bxh_ref[...], tx, preferred_element_type=jnp.float32)   # (TR, TC)
    sy = jnp.dot(byh_ref[...], ty, preferred_element_type=jnp.float32)

    # Sobel magnitude epilogue in f32 (v5e has no bf16 VPU/EUP).
    o_ref[0, 0] = jnp.sqrt(sx * sx + sy * sy)


# ----------------------------------------------------------------------------
# Full forward: DeepLabV3WithSHB.forward(x) -> {'out': ...}
# ----------------------------------------------------------------------------
def deeplabv3_with_shb(x, w_cls, b_cls, num_classes, *,
                       row_strip=1024, col_strip=512,
                       vmem_limit_bytes=48 * 1024 * 1024):
    N, Cin, H, W = x.shape
    Hout, Wout = 16 * H, 16 * W

    # Separable upsample + Sobel constants (zero-padding baked into the bands).
    a_h = _bilinear_matrix(H, Hout)                        # (Hout, H)
    a_w = _bilinear_matrix(W, Wout)                        # (Wout, W)
    bx_h = _conv1d_matrix(Hout, (1.0, 2.0, 1.0)) @ a_h     # smooth along rows
    by_h = _conv1d_matrix(Hout, (-1.0, 0.0, 1.0)) @ a_h    # diff   along rows
    bx_wt = (_conv1d_matrix(Wout, (-1.0, 0.0, 1.0)) @ a_w).T   # (W, Wout) diff cols
    by_wt = (_conv1d_matrix(Wout, (1.0, 2.0, 1.0)) @ a_w).T    # (W, Wout) smooth cols

    # Strip sizes: lane strip multiple of 128, row strip multiple of 8.
    tc = _pick_strip(Wout, col_strip, 128)
    tr = _pick_strip(Hout, row_strip, 8)
    n_r, n_c = Hout // tr, Wout // tc

    # Strip-interleaved fused W-pass operand: columns [s*2tc, s*2tc+tc) are the
    # Bx_w^T strip s, [s*2tc+tc, (s+1)*2tc) are the By_w^T strip s.
    bw_cat = jnp.stack([bx_wt.reshape(W, n_c, tc), by_wt.reshape(W, n_c, tc)],
                       axis=2).reshape(W, 2 * Wout).astype(jnp.bfloat16)
    bx_h = bx_h.astype(jnp.bfloat16)
    by_h = by_h.astype(jnp.bfloat16)

    # Classifier weights/bias as flat SMEM scalars: w[ci*nc + c], bias at [Cin*nc + c].
    w_flat = jnp.concatenate([w_cls.reshape(-1), b_cls.reshape(-1)]).astype(jnp.float32)

    kernel = functools.partial(_strip_kernel, cin=Cin, nc=num_classes)
    out = pl.pallas_call(
        kernel,
        out_shape=jax.ShapeDtypeStruct((N, num_classes, Hout, Wout), jnp.float32),
        grid=(N, num_classes, n_r, n_c),
        in_specs=[
            pl.BlockSpec(memory_space=pltpu.MemorySpace.SMEM),            # w_flat
            pl.BlockSpec((1, Cin, H, W), lambda n, c, r, s: (n, 0, 0, 0)),  # x
            pl.BlockSpec((W, 2 * tc), lambda n, c, r, s: (0, s)),           # fused W-pass
            pl.BlockSpec((tr, H), lambda n, c, r, s: (r, 0)),               # Bx_h strip
            pl.BlockSpec((tr, H), lambda n, c, r, s: (r, 0)),               # By_h strip
        ],
        out_specs=pl.BlockSpec((1, 1, tr, tc), lambda n, c, r, s: (n, c, r, s)),
        compiler_params=pltpu.CompilerParams(
            dimension_semantics=("parallel", "parallel", "parallel", "parallel"),
            vmem_limit_bytes=vmem_limit_bytes,
        ),
    )(w_flat, x, bw_cat, bx_h, by_h)
    return {"out": out}


# ----------------------------------------------------------------------------
# Pure-JAX (unfused) reference of the implemented forward, for a sanity check.
# ----------------------------------------------------------------------------
def _reference(x, w_cls, b_cls, num_classes):
    N, Cin, H, W = x.shape
    Hout, Wout = 16 * H, 16 * W
    logits = jnp.einsum("nchw,ck->nkhw", x, w_cls) + b_cls[None, :, None, None]
    a_h = _bilinear_matrix(H, Hout)
    a_w = _bilinear_matrix(W, Wout)
    up = jnp.einsum("ri,nkij,cj->nkrc", a_h, logits, a_w)
    pad = jnp.pad(up, ((0, 0), (0, 0), (1, 1), (1, 1)))
    kx = [[-1.0, 0.0, 1.0], [-2.0, 0.0, 2.0], [-1.0, 0.0, 1.0]]
    ky = [[-1.0, -2.0, -1.0], [0.0, 0.0, 0.0], [1.0, 2.0, 1.0]]
    sx = sum(kx[a][b] * pad[:, :, a:a + Hout, b:b + Wout]
             for a in range(3) for b in range(3))
    sy = sum(ky[a][b] * pad[:, :, a:a + Hout, b:b + Wout]
             for a in range(3) for b in range(3))
    return jnp.sqrt(sx * sx + sy * sy)


if __name__ == "__main__":
    key = jax.random.PRNGKey(0)
    k_x, k_w, k_b = jax.random.split(key, 3)

    N, Cin, H, W = 2, 3, 16, 16
    num_classes = 4

    x = jax.random.normal(k_x, (N, Cin, H, W), dtype=jnp.float32)
    w_cls = jax.random.normal(k_w, (Cin, num_classes), dtype=jnp.float32) * 0.1
    b_cls = jax.random.normal(k_b, (num_classes,), dtype=jnp.float32) * 0.1

    result = deeplabv3_with_shb(x, w_cls, b_cls, num_classes)
    out = jax.block_until_ready(result["out"])

    assert out.shape == (N, num_classes, 16 * H, 16 * W), out.shape
    assert out.dtype == jnp.float32
    assert bool(jnp.all(jnp.isfinite(out)))
    assert bool(jnp.all(out >= 0.0))  # sqrt of sum of squares is non-negative

    ref = jax.block_until_ready(_reference(x, w_cls, b_cls, num_classes))
    max_err = float(jnp.max(jnp.abs(out - ref)))
    scale = float(jnp.max(jnp.abs(ref)))
    assert max_err <= 5e-2 + 5e-2 * scale, (max_err, scale)

    print("KERNEL_OK")
</pallas_src>

<mosaic_0001>
module attributes {stable_mosaic.version = 11 : i64} {
  func.func @_strip_kernel(%arg0: i32, %arg1: i32, %arg2: i32, %arg3: i32, %arg4: memref<16xf32, #tpu.memory_space<smem>>, %arg5: memref<1x3x16x16xf32, #tpu.memory_space<vmem>>, %arg6: memref<16x512xbf16, #tpu.memory_space<vmem>>, %arg7: memref<256x16xbf16, #tpu.memory_space<vmem>>, %arg8: memref<256x16xbf16, #tpu.memory_space<vmem>>, %arg9: memref<1x1x256x256xf32, #tpu.memory_space<vmem>>) attributes {dimension_semantics = [#tpu.dimension_semantics<parallel>, #tpu.dimension_semantics<parallel>, #tpu.dimension_semantics<parallel>, #tpu.dimension_semantics<parallel>], iteration_bounds = array<i64: 2, 4, 1, 1>, scalar_prefetch = 0 : i64, scratch_operands = 0 : i64, tpu.core_type = #tpu.core_type<tc>, window_params = [{transform_indices = @transform_0, window_bounds = array<i64: 16>}, {transform_indices = @transform_1, window_bounds = array<i64: 1, 3, 16, 16>}, {transform_indices = @transform_2, window_bounds = array<i64: 16, 512>}, {transform_indices = @transform_3, window_bounds = array<i64: 256, 16>}, {transform_indices = @transform_4, window_bounds = array<i64: 256, 16>}, {transform_indices = @transform_5, window_bounds = array<i64: 1, 1, 256, 256>}]} {
    %c0 = arith.constant 0 : index
    %c0_0 = arith.constant 0 : index
    %c0_1 = arith.constant 0 : index
    %c0_2 = arith.constant 0 : index
    %0 = vector.load %arg5[%c0, %c0_0, %c0_1, %c0_2] : memref<1x3x16x16xf32, #tpu.memory_space<vmem>>, vector<1x3x16x16xf32>
    %1 = vector.shape_cast %0 : vector<1x3x16x16xf32> to vector<3x16x16xf32>
    %2 = vector.extract_strided_slice %1 {offsets = [0, 0, 0], sizes = [1, 16, 16], strides = [1, 1, 1]} : vector<3x16x16xf32> to vector<1x16x16xf32>
    %3 = vector.shape_cast %2 : vector<1x16x16xf32> to vector<16x16xf32>
    %c0_i32 = arith.constant 0 : i32
    %4 = arith.addi %c0_i32, %arg1 : i32
    %5 = arith.index_cast %4 : i32 to index
    %6 = memref.load %arg4[%5] : memref<16xf32, #tpu.memory_space<smem>>
    %7 = vector.broadcast %6 : f32 to vector<16x16xf32>
    %8 = arith.mulf %3, %7 : vector<16x16xf32>
    %9 = vector.extract_strided_slice %1 {offsets = [1, 0, 0], sizes = [1, 16, 16], strides = [1, 1, 1]} : vector<3x16x16xf32> to vector<1x16x16xf32>
    %10 = vector.shape_cast %9 : vector<1x16x16xf32> to vector<16x16xf32>
    %c4_i32 = arith.constant 4 : i32
    %11 = arith.addi %c4_i32, %arg1 : i32
    %12 = arith.index_cast %11 : i32 to index
    %13 = memref.load %arg4[%12] : memref<16xf32, #tpu.memory_space<smem>>
    %14 = vector.broadcast %13 : f32 to vector<16x16xf32>
    %15 = arith.mulf %10, %14 : vector<16x16xf32>
    %16 = arith.addf %8, %15 : vector<16x16xf32>
    %17 = vector.extract_strided_slice %1 {offsets = [2, 0, 0], sizes = [1, 16, 16], strides = [1, 1, 1]} : vector<3x16x16xf32> to vector<1x16x16xf32>
    %18 = vector.shape_cast %17 : vector<1x16x16xf32> to vector<16x16xf32>
    %c8_i32 = arith.constant 8 : i32
    %19 = arith.addi %c8_i32, %arg1 : i32
    %20 = arith.index_cast %19 : i32 to index
    %21 = memref.load %arg4[%20] : memref<16xf32, #tpu.memory_space<smem>>
    %22 = vector.broadcast %21 : f32 to vector<16x16xf32>
    %23 = arith.mulf %18, %22 : vector<16x16xf32>
    %24 = arith.addf %16, %23 : vector<16x16xf32>
    %c12_i32 = arith.constant 12 : i32
    %25 = arith.addi %c12_i32, %arg1 : i32
    %26 = arith.index_cast %25 : i32 to index
    %27 = memref.load %arg4[%26] : memref<16xf32, #tpu.memory_space<smem>>
    %28 = vector.broadcast %27 : f32 to vector<16x16xf32>
    %29 = arith.addf %24, %28 : vector<16x16xf32>
    %30 = arith.truncf %29 : vector<16x16xf32> to vector<16x16xbf16>
    %c0_3 = arith.constant 0 : index
    %c0_4 = arith.constant 0 : index
    %31 = vector.load %arg6[%c0_3, %c0_4] : memref<16x512xbf16, #tpu.memory_space<vmem>>, vector<16x512xbf16>
    %cst = arith.constant dense<0.000000e+00> : vector<16x512xf32>
    %32 = tpu.matmul %30, %31, %cst {dimension_numbers = #tpu.dot_dimension_numbers<[1], [0], [0], [1], [0, 0, 1, 1], [], []>} : vector<16x16xbf16>, vector<16x512xbf16>, vector<16x512xf32> -> vector<16x512xf32>
    %33 = vector.extract_strided_slice %32 {offsets = [0, 0], sizes = [16, 256], strides = [1, 1]} : vector<16x512xf32> to vector<16x256xf32>
    %34 = arith.truncf %33 : vector<16x256xf32> to vector<16x256xbf16>
    %35 = vector.extract_strided_slice %32 {offsets = [0, 256], sizes = [16, 256], strides = [1, 1]} : vector<16x512xf32> to vector<16x256xf32>
    %36 = arith.truncf %35 : vector<16x256xf32> to vector<16x256xbf16>
    %c0_5 = arith.constant 0 : index
    %c0_6 = arith.constant 0 : index
    %37 = vector.load %arg7[%c0_5, %c0_6] : memref<256x16xbf16, #tpu.memory_space<vmem>>, vector<256x16xbf16>
    %cst_7 = arith.constant dense<0.000000e+00> : vector<256x256xf32>
    %38 = tpu.matmul %37, %34, %cst_7 {dimension_numbers = #tpu.dot_dimension_numbers<[1], [0], [0], [1], [0, 0, 1, 1], [], []>} : vector<256x16xbf16>, vector<16x256xbf16>, vector<256x256xf32> -> vector<256x256xf32>
    %c0_8 = arith.constant 0 : index
    %c0_9 = arith.constant 0 : index
    %39 = vector.load %arg8[%c0_8, %c0_9] : memref<256x16xbf16, #tpu.memory_space<vmem>>, vector<256x16xbf16>
    %cst_10 = arith.constant dense<0.000000e+00> : vector<256x256xf32>
    %40 = tpu.matmul %39, %36, %cst_10 {dimension_numbers = #tpu.dot_dimension_numbers<[1], [0], [0], [1], [0, 0, 1, 1], [], []>} : vector<256x16xbf16>, vector<16x256xbf16>, vector<256x256xf32> -> vector<256x256xf32>
    %41 = arith.mulf %38, %38 : vector<256x256xf32>
    %42 = arith.mulf %40, %40 : vector<256x256xf32>
    %43 = arith.addf %41, %42 : vector<256x256xf32>
    %44 = math.sqrt %43 : vector<256x256xf32>
    %c0_11 = arith.constant 0 : index
    %c0_12 = arith.constant 0 : index
    %c0_13 = arith.constant 0 : index
    %c0_14 = arith.constant 0 : index
    %45 = vector.load %arg9[%c0_11, %c0_12, %c0_13, %c0_14] : memref<1x1x256x256xf32, #tpu.memory_space<vmem>>, vector<1x1x256x256xf32>
    %46 = vector.shape_cast %45 : vector<1x1x256x256xf32> to vector<256x256xf32>
    %47 = vector.shape_cast %44 : vector<256x256xf32> to vector<1x1x256x256xf32>
    tpu.vector_store %arg9[%c0_11, %c0_12, %c0_13, %c0_14], %47 {strides = array<i32>} : memref<1x1x256x256xf32, #tpu.memory_space<vmem>>, vector<1x1x256x256xf32>,
    return
  }
  func.func @transform_0(%arg0: i32, %arg1: i32, %arg2: i32, %arg3: i32) -> i32 {
    %c0_i32 = arith.constant 0 : i32
    %c0_i32_0 = arith.constant 0 : i32
    return %c0_i32 : i32
  }
  func.func @transform_1(%arg0: i32, %arg1: i32, %arg2: i32, %arg3: i32) -> (i32, i32, i32, i32) {
    %c0_i32 = arith.constant 0 : i32
    %c0_i32_0 = arith.constant 0 : i32
    %c0_i32_1 = arith.constant 0 : i32
    %c0_i32_2 = arith.constant 0 : i32
    return %arg0, %c0_i32, %c0_i32_0, %c0_i32_1 : i32, i32, i32, i32
  }
  func.func @transform_2(%arg0: i32, %arg1: i32, %arg2: i32, %arg3: i32) -> (i32, i32) {
    %c0_i32 = arith.constant 0 : i32
    %c0_i32_0 = arith.constant 0 : i32
    return %c0_i32, %arg3 : i32, i32
  }
  func.func @transform_3(%arg0: i32, %arg1: i32, %arg2: i32, %arg3: i32) -> (i32, i32) {
    %c0_i32 = arith.constant 0 : i32
    %c0_i32_0 = arith.constant 0 : i32
    return %arg2, %c0_i32 : i32, i32
  }
  func.func @transform_4(%arg0: i32, %arg1: i32, %arg2: i32, %arg3: i32) -> (i32, i32) {
    %c0_i32 = arith.constant 0 : i32
    %c0_i32_0 = arith.constant 0 : i32
    return %arg2, %c0_i32 : i32, i32
  }
  func.func @transform_5(%arg0: i32, %arg1: i32, %arg2: i32, %arg3: i32) -> (i32, i32, i32, i32) {
    %c0_i32 = arith.constant 0 : i32
    return %arg0, %arg1, %arg2, %arg3 : i32, i32, i32, i32
  }
}

</mosaic_0001>

<llo_original>
// kernel: tpu_custom_call.1
$region0: #{tpu_custom_call.1}
  #allocation0 [shape = 'u32[]', space=smem, size = 0x4, offset = 0x4, fixed_abs, tag = 'smem constant byte address 0x4 - core index']
  #allocation1 [shape = 'u32[144,128]{1,0:T(1,128)}', space=vmem, size = 0x12000, scoped, tag = 'internal scratch']
  %s0 = inlined_call_operand.hbm [shape: f32[16], index: 0, kind: input, shape index: {}]
  %s1 = inlined_call_operand.hbm [shape: f32[2,3,16,16], index: 1, kind: input, shape index: {}]
  %s2 = inlined_call_operand.hbm [shape: bf16[16,512], index: 2, kind: input, shape index: {}]
  %s3 = inlined_call_operand.vmem [shape: bf16[256,16], index: 3, kind: input, shape index: {}]
  %s4 = inlined_call_operand.vmem [shape: bf16[256,16], index: 4, kind: input, shape index: {}]
  %s5 = inlined_call_operand.hbm [shape: f32[2,4,256,256], index: 5, kind: output, shape index: {}]
  %s6 = sld [smem:[#allocation0]]
  $region65: #{tpu_custom_call.1} parent=0
    _
  %s8 = ssub.s32 1, %s6
  %s9 = scalar_select 0, %s8, %s6
  $region1: #{tpu_custom_call.1} parent=0
    #allocation2 [shape = 'u8[512]{0}', space=smem, size = 0x200, scoped, tag = 'input window, operand 0, single buffered']
    #allocation3 [shape = 's32[2]{0}', space=sflag, size = 0x8, scoped, tag = 'scoped memory for tpu_custom_call.1']
    #allocation4 [shape = 's32[2]{0}', space=sflag, size = 0x8, scoped, tag = 'scoped memory for tpu_custom_call.1']
    #allocation5 [shape = 's32[2]{0}', space=sflag, size = 0x8, scoped, tag = 'scoped memory for tpu_custom_call.1']
    #allocation6 [shape = 'u8[49152]{0}', space=vmem, size = 0xc000, scoped, tag = 'input window, operand 1']
    #allocation7 [shape = 'u8[16384]{0}', space=vmem, size = 0x4000, scoped, tag = 'input window, operand 2, single buffered']
    #allocation8 [shape = 's32[1]{0}', space=sflag, size = 0x4, scoped, tag = 'scoped memory for tpu_custom_call.1']
    #allocation9 [shape = 'u8[524288]{0}', space=vmem, size = 0x80000, scoped, tag = 'output window, operand 0']
    %10 = vsyncpa [#allocation5], 0
    %11 = vsyncpa [#allocation3], 0
    %s12 = scalar_lea.sflag [#allocation3], 1
    %13 = vsyncpa %s12, 0
    %14 = vsyncpa [#allocation8], 0
    %15 = vsyncpa [#allocation4], 0
    %s16 = scalar_lea.sflag [#allocation4], 1
    %17 = vsyncpa %s16, 0
    loop: start=0, step=1, limit=10
    $region2: #{tpu_custom_call.1} parent=1 // loop_pre_header
      _
    $region3: #{tpu_custom_call.1} parent=1 // loop_header
      %s19 = sphi 0, %s23
      %p20 = scmp.ge.s32.totalorder %s19, 10
      %s26 = sphi 0, %s52
      %s27 = sphi 0, %s48
      %s28 = sphi 0, %s44
      %s29 = sphi 0, %s40
      %s30 = sphi 0, %s26
      %s31 = sphi 0, %s27
      %s32 = sphi 0, %s28
      %s33 = sphi 0, %s29
      %s34 = sphi 0, %s30
      %s35 = sphi 0, %s31
      %s36 = sphi 0, %s32
      %s37 = sphi 0, %s33
      %s53 = sphi 0, %s53
      %s55 = sphi 0, %s53
      %s56 = sphi 0, %s55
      %s70 = sphi 0, %s56
      %s76 = sphi 0, %s78
      %s79 = sphi 0, %s76
      %s80 = sphi 0, %s79
      %s96 = sphi 0, %s80
      %s102 = sphi 0, %s104
      %s105 = sphi 0, %s102
      %s106 = sphi 0, %s105
      %s122 = sphi 0, %s106
      %s128 = sphi 0, %s130
      %s131 = sphi 0, %s128
      %s132 = sphi 0, %s131
      %s148 = sphi 0, %s132
      %s154 = sphi 0, %s156
      %s157 = sphi 0, %s154
      %s158 = sphi 0, %s157
      %s174 = sphi 0, %s158
      %s186 = sphi 0, %s188
      %s189 = sphi 0, %s186
      %s190 = sphi 0, %s189
      %s206 = sphi 0, %s190
    $region4: #{tpu_custom_call.1} parent=1 // loop_header_branch
      %22 = sbr.rel (%p20) target = $region8
    $region5: #{tpu_custom_call.1} parent=1 // loop_body
      %s24 = ssub.s32 %s19, 1
      %s25 = ssub.s32 %s19, 2
      %s38 = sadd.s32 1, %s29
      %p39 = scmp.ge.s32.totalorder %s38, 1
      %s40 = scalar_select %p39, 0, %s38
      %s41 = sadd.s32 1, %s28
      %s42 = scalar_select %p39, %s41, %s28
      %p43 = scmp.ge.s32.totalorder %s42, 1
      %s44 = scalar_select %p43, 0, %s42
      %s45 = sadd.s32 1, %s27
      %s46 = scalar_select %p43, %s45, %s27
      %p47 = scmp.ge.s32.totalorder %s46, 4
      %s48 = scalar_select %p47, 0, %s46
      %s49 = sadd.s32 1, %s26
      %s50 = scalar_select %p47, %s49, %s26
      %p51 = scmp.ge.s32.totalorder %s50, 2
      %s52 = scalar_select %p51, 0, %s50
      %s54 = sadd.s32 %s53, 1
      %p57 = scmp.eq.s32.totalorder %s19, 7
      %p58 = scmp.ne.s32.totalorder %s53, %s55
      %p59 = scmp.eq.s32.totalorder %s19, 0
      %p60 = por %p58, %p59
      %p61 = scmp.ne.s32.totalorder %s53, %s55
      %p62 = scmp.eq.s32.totalorder %s24, 7
      %p63 = por %p61, %p62
      %p64 = scmp.ne.s32.totalorder %s55, %s56
      %p65 = scmp.eq.s32.totalorder %s24, 0
      %p66 = por %p64, %p65
      %p67 = scmp.ne.s32.totalorder %s55, %s56
      %p68 = scmp.eq.s32.totalorder %s25, 7
      %p69 = por %p67, %p68
      %p71 = scmp.ne.s32.totalorder %s56, %s70
      %p72 = scmp.eq.s32.totalorder %s25, 0
      %p73 = por %p71, %p72
      %s74 = ssub.s32 %s26, %s52
      %p75 = scmp.eq.s32.totalorder %s74, 0
      %s77 = sadd.s32 %s76, 1
      %s78 = scalar_select %p75, %s76, %s77
      %p81 = pneg %p75
      %p82 = scmp.eq.s32.totalorder %s19, 7
      %p83 = por %p81, %p82
      %p84 = scmp.ne.s32.totalorder %s76, %s79
      %p85 = scmp.eq.s32.totalorder %s19, 0
      %p86 = por %p84, %p85
      %p87 = scmp.ne.s32.totalorder %s76, %s79
      %p88 = scmp.eq.s32.totalorder %s24, 7
      %p89 = por %p87, %p88
      %p90 = scmp.ne.s32.totalorder %s79, %s80
      %p91 = scmp.eq.s32.totalorder %s24, 0
      %p92 = por %p90, %p91
      %p93 = scmp.ne.s32.totalorder %s79, %s80
      %p94 = scmp.eq.s32.totalorder %s25, 7
      %p95 = por %p93, %p94
      %p97 = scmp.ne.s32.totalorder %s80, %s96
      %p98 = scmp.eq.s32.totalorder %s25, 0
      %p99 = por %p97, %p98
      %s100 = ssub.s32 %s29, %s40
      %p101 = scmp.eq.s32.totalorder %s100, 0
      %s103 = sadd.s32 %s102, 1
      %s104 = scalar_select %p101, %s102, %s103
      %p107 = pneg %p101
      %p108 = scmp.eq.s32.totalorder %s19, 7
      %p109 = por %p107, %p108
      %p110 = scmp.ne.s32.totalorder %s102, %s105
      %p111 = scmp.eq.s32.totalorder %s19, 0
      %p112 = por %p110, %p111
      %p113 = scmp.ne.s32.totalorder %s102, %s105
      %p114 = scmp.eq.s32.totalorder %s24, 7
      %p115 = por %p113, %p114
      %p116 = scmp.ne.s32.totalorder %s105, %s106
      %p117 = scmp.eq.s32.totalorder %s24, 0
      %p118 = por %p116, %p117
      %p119 = scmp.ne.s32.totalorder %s105, %s106
      %p120 = scmp.eq.s32.totalorder %s25, 7
      %p121 = por %p119, %p120
      %p123 = scmp.ne.s32.totalorder %s106, %s122
      %p124 = scmp.eq.s32.totalorder %s25, 0
      %p125 = por %p123, %p124
      %s126 = ssub.s32 %s28, %s44
      %p127 = scmp.eq.s32.totalorder %s126, 0
      %s129 = sadd.s32 %s128, 1
      %s130 = scalar_select %p127, %s128, %s129
      %p133 = pneg %p127
      %p134 = scmp.eq.s32.totalorder %s19, 7
      %p135 = por %p133, %p134
      %p136 = scmp.ne.s32.totalorder %s128, %s131
      %p137 = scmp.eq.s32.totalorder %s19, 0
      %p138 = por %p136, %p137
      %p139 = scmp.ne.s32.totalorder %s128, %s131
      %p140 = scmp.eq.s32.totalorder %s24, 7
      %p141 = por %p139, %p140
      %p142 = scmp.ne.s32.totalorder %s131, %s132
      %p143 = scmp.eq.s32.totalorder %s24, 0
      %p144 = por %p142, %p143
      %p145 = scmp.ne.s32.totalorder %s131, %s132
      %p146 = scmp.eq.s32.totalorder %s25, 7
      %p147 = por %p145, %p146
      %p149 = scmp.ne.s32.totalorder %s132, %s148
      %p150 = scmp.eq.s32.totalorder %s25, 0
      %p151 = por %p149, %p150
      %s152 = ssub.s32 %s28, %s44
      %p153 = scmp.eq.s32.totalorder %s152, 0
      %s155 = sadd.s32 %s154, 1
      %s156 = scalar_select %p153, %s154, %s155
      %p159 = pneg %p153
      %p160 = scmp.eq.s32.totalorder %s19, 7
      %p161 = por %p159, %p160
      %p162 = scmp.ne.s32.totalorder %s154, %s157
      %p163 = scmp.eq.s32.totalorder %s19, 0
      %p164 = por %p162, %p163
      %p165 = scmp.ne.s32.totalorder %s154, %s157
      %p166 = scmp.eq.s32.totalorder %s24, 7
      %p167 = por %p165, %p166
      %p168 = scmp.ne.s32.totalorder %s157, %s158
      %p169 = scmp.eq.s32.totalorder %s24, 0
      %p170 = por %p168, %p169
      %p171 = scmp.ne.s32.totalorder %s157, %s158
      %p172 = scmp.eq.s32.totalorder %s25, 7
      %p173 = por %p171, %p172
      %p175 = scmp.ne.s32.totalorder %s158, %s174
      %p176 = scmp.eq.s32.totalorder %s25, 0
      %p177 = por %p175, %p176
      %s178 = ssub.s32 %s26, %s52
      %s179 = ssub.s32 %s27, %s48
      %s180 = sor.u32 %s178, %s179
      %s181 = ssub.s32 %s28, %s44
      %s182 = sor.u32 %s180, %s181
      %s183 = ssub.s32 %s29, %s40
      %s184 = sor.u32 %s182, %s183
      %p185 = scmp.eq.s32.totalorder %s184, 0
      %s187 = sadd.s32 %s186, 1
      %s188 = scalar_select %p185, %s186, %s187
      %p191 = pneg %p185
      %p192 = scmp.eq.s32.totalorder %s19, 7
      %p193 = por %p191, %p192
      %p194 = scmp.ne.s32.totalorder %s186, %s189
      %p195 = scmp.eq.s32.totalorder %s19, 0
      %p196 = por %p194, %p195
      %p197 = scmp.ne.s32.totalorder %s186, %s189
      %p198 = scmp.eq.s32.totalorder %s24, 7
      %p199 = por %p197, %p198
      %p200 = scmp.ne.s32.totalorder %s189, %s190
      %p201 = scmp.eq.s32.totalorder %s24, 0
      %p202 = por %p200, %p201
      %p203 = scmp.ne.s32.totalorder %s189, %s190
      %p204 = scmp.eq.s32.totalorder %s25, 7
      %p205 = por %p203, %p204
      %p207 = scmp.ne.s32.totalorder %s190, %s206
      %p208 = scmp.eq.s32.totalorder %s25, 0
      %p209 = por %p207, %p208
      %p210 = scmp.le.s32.totalorder 1, %s19
      %p211 = scmp.lt.s32.totalorder %s19, 9
      %p212 = pnand %p210, %p211
      %p213 = pneg %p212
      // Predicated region
      $region9: #{tpu_custom_call.1} parent=5 // pred_check
        _
      $region10: #{tpu_custom_call.1} parent=5 // pred_check_branch
        %215 = sbr.rel (%p212) target = $region12
      $region11: #{tpu_custom_call.1} parent=5 // pred_region
        %s216 = ssub.s32 %s19, 1
        // Predicated region
        $region13: #{tpu_custom_call.1} parent=11 // pred_check
          %p217 = pneg %p66
        $region14: #{tpu_custom_call.1} parent=11 // pred_check_branch
          %219 = sbr.rel (%p217) target = $region16
        $region15: #{tpu_custom_call.1} parent=11 // pred_region
          %s221 = ssub.s32 16, 16
          %222 = vsyncadd [#allocation5], %s221
          %225 = dma.hbm_to_smem %s0, 16, [#allocation2], [#allocation5]
        $region16: #{tpu_custom_call.1} parent=11 // pred_fallthru
          _
        // Predicated region
        $region17: #{tpu_custom_call.1} parent=11 // pred_check
          %p226 = pneg %p118
        $region18: #{tpu_custom_call.1} parent=11 // pred_check_branch
          %228 = sbr.rel (%p226) target = $region20
        $region19: #{tpu_custom_call.1} parent=11 // pred_region
          %s229 = smul.u32 4, %s33
          %s231 = ssub.s32 512, 512
          %232 = vsyncadd [#allocation8], %s231
          %s233 = smul.addr %s229, 64
          %s234 = scalar_lea.hbm %s2, %s233
          %s235 = sshll.u32 [#allocation7], 4
          %s236 = int_to_ptr.vmem [resolvable:$true] %s235
          %241 = dma.hbm_to_vmem [thread:$0]  %s234, 512, %s236, [#allocation8], 256, 256, 16
        $region20: #{tpu_custom_call.1} parent=11 // pred_fallthru
          _
        // Predicated region
        $region21: #{tpu_custom_call.1} parent=11 // pred_check
          %p242 = pneg %p144
        $region22: #{tpu_custom_call.1} parent=11 // pred_check_branch
          %244 = sbr.rel (%p242) target = $region24
        $region23: #{tpu_custom_call.1} parent=11 // pred_region
          %s245 = smul.u32 32, %s32
          %p246 = scmp.lt.s32.totalorder %s245, 31
          %s247 = scalar_select %p246, %s245, 31
          %s248 = smul.addr %s247, 4
          %s249 = scalar_lea.vmem %s3, %s248
          %s250 = smul.u32 32, %s32
        $region24: #{tpu_custom_call.1} parent=11 // pred_fallthru
          _
        // Predicated region
        $region25: #{tpu_custom_call.1} parent=11 // pred_check
          %p251 = pneg %p170
        $region26: #{tpu_custom_call.1} parent=11 // pred_check_branch
          %253 = sbr.rel (%p251) target = $region28
        $region27: #{tpu_custom_call.1} parent=11 // pred_region
          %s254 = smul.u32 32, %s32
          %p255 = scmp.lt.s32.totalorder %s254, 31
          %s256 = scalar_select %p255, %s254, 31
          %s257 = smul.addr %s256, 4
          %s258 = scalar_lea.vmem %s4, %s257
          %s259 = smul.u32 32, %s32
        $region28: #{tpu_custom_call.1} parent=11 // pred_fallthru
          _
      $region12: #{tpu_custom_call.1} parent=5 // pred_fallthru
        _
      %p260 = scmp.lt.s32.totalorder %s19, 8
      // Predicated region
      $region29: #{tpu_custom_call.1} parent=5 // pred_check
        %p261 = pneg %p260
      $region30: #{tpu_custom_call.1} parent=5 // pred_check_branch
        %263 = sbr.rel (%p261) target = $region32
      $region31: #{tpu_custom_call.1} parent=5 // pred_region
        // Predicated region
        $region33: #{tpu_custom_call.1} parent=31 // pred_check
          %p264 = pneg %p86
        $region34: #{tpu_custom_call.1} parent=31 // pred_check_branch
          %266 = sbr.rel (%p264) target = $region36
        $region35: #{tpu_custom_call.1} parent=31 // pred_region
          %s267 = sand.u32 %s76, 1
          %s268 = scalar_lea.sflag [#allocation3], %s267
          %s269 = sand.u32 %s76, 1
          %s270 = smul.addr %s269, 48
          %s271 = scalar_lea.vmem [#allocation6], %s270
          %s273 = ssub.s32 768, 768
          %274 = vsyncadd %s268, %s273
          %s275 = smul.addr %s26, 6
          %s276 = smul.addr %s275, 128
          %s277 = scalar_lea.hbm %s1, %s276
          %s278 = sshll.u32 %s271, 4
          %s279 = int_to_ptr.vmem [resolvable:$true] %s278
          %284 = dma.hbm_to_vmem [thread:$0]  %s277, 768, %s279, %s268, 128, 128, 8
        $region36: #{tpu_custom_call.1} parent=31 // pred_fallthru
          _
      $region32: #{tpu_custom_call.1} parent=5 // pred_fallthru
        _
      %p285 = scmp.le.s32.totalorder 1, %s19
      %p286 = scmp.lt.s32.totalorder %s19, 9
      %p287 = pnand %p285, %p286
      %p288 = pneg %p287
      // Predicated region
      $region37: #{tpu_custom_call.1} parent=5 // pred_check
        _
      $region38: #{tpu_custom_call.1} parent=5 // pred_check_branch
        %290 = sbr.rel (%p287) target = $region40
      $region39: #{tpu_custom_call.1} parent=5 // pred_region
        %s291 = ssub.s32 %s19, 1
        // Predicated region
        $region41: #{tpu_custom_call.1} parent=39 // pred_check
          %p292 = pneg %p66
        $region42: #{tpu_custom_call.1} parent=39 // pred_check_branch
          %294 = sbr.rel (%p292) target = $region44
        $region43: #{tpu_custom_call.1} parent=39 // pred_region
          %295 = dma.done [#allocation5], 16
        $region44: #{tpu_custom_call.1} parent=39 // pred_fallthru
          _
        %s296 = sand.u32 %s79, 1
        %s297 = scalar_lea.sflag [#allocation3], %s296
        %s298 = sand.u32 %s79, 1
        %s299 = smul.addr %s298, 48
        %s300 = scalar_lea.vmem [#allocation6], %s299
        // Predicated region
        $region45: #{tpu_custom_call.1} parent=39 // pred_check
          %p301 = pneg %p92
        $region46: #{tpu_custom_call.1} parent=39 // pred_check_branch
          %303 = sbr.rel (%p301) target = $region48
        $region47: #{tpu_custom_call.1} parent=39 // pred_region
          %304 = dma.done %s297, 768
        $region48: #{tpu_custom_call.1} parent=39 // pred_fallthru
          _
        // Predicated region
        $region49: #{tpu_custom_call.1} parent=39 // pred_check
          %p305 = pneg %p118
        $region50: #{tpu_custom_call.1} parent=39 // pred_check_branch
          %307 = sbr.rel (%p305) target = $region52
        $region51: #{tpu_custom_call.1} parent=39 // pred_region
          %308 = dma.done [#allocation8], 512
        $region52: #{tpu_custom_call.1} parent=39 // pred_fallthru
          _
        %309 = sfence
        %p310 = pneg %p66
        %p311 = pneg %p63
        %s312 = sand.u32 %s79, 1
        %s313 = scalar_lea.sflag [#allocation3], %s312
        %s314 = sand.u32 %s79, 1
        %s315 = smul.addr %s314, 48
        %s316 = scalar_lea.vmem [#allocation6], %s315
        %p317 = pneg %p92
        %p318 = pneg %p89
        %p319 = pneg %p118
        %p320 = pneg %p115
        %s321 = smul.u32 32, %s32
        %p322 = scmp.lt.s32.totalorder %s321, 31
        %s323 = scalar_select %p322, %s321, 31
        %s324 = smul.addr %s323, 4
        %s325 = scalar_lea.vmem %s3, %s324
        %p326 = pneg %p144
        %p327 = pneg %p141
        %s328 = smul.u32 32, %s32
        %p329 = scmp.lt.s32.totalorder %s328, 31
        %s330 = scalar_select %p329, %s328, 31
        %s331 = smul.addr %s330, 4
        %s332 = scalar_lea.vmem %s4, %s331
        %p333 = pneg %p170
        %p334 = pneg %p167
        %p335 = pneg %p202
        %p336 = pneg %p199
        %s337 = sand.u32 %s189, 1
        %s338 = scalar_lea.sflag [#allocation4], %s337
        %s339 = sand.u32 %s189, 1
        %s340 = smul.addr %s339, 512
        %s341 = scalar_lea.vmem [#allocation9], %s340
        %s342 = smul.u32 4, %s33
        %s343 = smul.u32 32, %s32
        %p344 = scmp.lt.s32.totalorder %s343, 31
        %s345 = scalar_select %p344, %s343, 31
        %s346 = smul.addr %s345, 4
        %s347 = scalar_lea.vmem %s3, %s346
        %s348 = smul.u32 32, %s32
        %s349 = smul.u32 32, %s32
        %p350 = scmp.lt.s32.totalorder %s349, 31
        %s351 = scalar_select %p350, %s349, 31
        %s352 = smul.addr %s351, 4
        %s353 = scalar_lea.vmem %s4, %s352
        %s354 = smul.u32 32, %s32
        %s355 = smul.u32 32, %s32
        %s356 = smul.u32 2, %s33
        %v358 = vld [vmem:[%s300] sm:$0xff]
        %v359 = vld [vmem:[%s300 + $0x8] sm:$0xff]
        %v360 = vld [vmem:[%s300 + $0x10] sm:$0xff]
        %v361 = vld [vmem:[%s300 + $0x18] sm:$0xff]
        %v362 = vld [vmem:[%s300 + $0x20] sm:$0xff]
        %v363 = vld [vmem:[%s300 + $0x28] sm:$0xff]
        %s364 = sld [smem:[#allocation2 + %s31]]
        %v365 = vstv %s364
        %v366 = vmul.f32 %v358, %v365
        %v367 = vmul.f32 %v359, %v365
        %s368 = sadd.s32 %s31, 4
        %s369 = sld [smem:[#allocation2 + %s368]]
        %v370 = vstv %s369
        %v371 = vmul.f32 %v360, %v370
        %v372 = vmul.f32 %v361, %v370
        %v373 = vadd.f32 %v366, %v371
        %v374 = vadd.f32 %v367, %v372
        %s375 = sadd.s32 %s31, 8
        %s376 = sld [smem:[#allocation2 + %s375]]
        %v377 = vstv %s376
        %v378 = vmul.f32 %v362, %v377
        %v379 = vmul.f32 %v363, %v377
        %v380 = vadd.f32 %v373, %v378
        %v381 = vadd.f32 %v374, %v379
        %s382 = sadd.s32 %s31, 12
        %s383 = sld [smem:[#allocation2 + %s382]]
        %v384 = vstv %s383
        %v385 = vadd.f32 %v380, %v384
        %v386 = vadd.f32 %v381, %v384
        %v387 = vpack.c.bf16 %v386, %v385
        %v388 = vld [vmem:[#allocation7] sm:$0xff]
        %v389 = vld [vmem:[#allocation7 + $0x8] sm:$0xff]
        %v390 = vld [vmem:[#allocation7 + $0x10] sm:$0xff]
        %v391 = vld [vmem:[#allocation7 + $0x18] sm:$0xff]
        %v396 = vunpack.c.l.b16 %v388
        %v397 = vunpack.c.h.b16 %v388
        %v398 = vunpack.c.l.b16 %v389
        %v399 = vunpack.c.h.b16 %v389
        %v400 = vunpack.c.l.b16 %v390
        %v401 = vunpack.c.h.b16 %v390
        %v402 = vunpack.c.l.b16 %v391
        %v403 = vunpack.c.h.b16 %v391
        %v404 = vpack.c.b16 %v400, %v396
        %v405 = vpack.c.b16 %v401, %v397
        %v406 = vpack.c.b16 %v402, %v398
        %v407 = vpack.c.b16 %v403, %v399
        %vm412 = vcmask 130048
        %v414 = vsel %vm412, %v387, 0
        %416 = vmatprep.subr.bf16.mxu0 0
        %417 = vmatpush1.bf16.msra.mxu0 0
        %418 = vmatprep.subr.bf16.mxu0 0
        %419 = vmatpush1.bf16.msra.mxu0 0
        %420 = vmatprep.subr.bf16.mxu0 0
        %421 = vmatpush1.bf16.msra.mxu0 0
        %422 = vmatprep.subr.bf16.mxu0 0
        %423 = vmatpush1.bf16.msra.mxu0 0
        %424 = vmatprep.subr.bf16.mxu0 0
        %425 = vmatpush1.bf16.msra.mxu0 0
        %426 = vmatprep.subr.bf16.mxu0 0
        %427 = vmatpush1.bf16.msra.mxu0 0
        %428 = vmatprep.subr.bf16.mxu0 0
        %429 = vmatpush1.bf16.msra.mxu0 0
        %430 = vmatprep.subr.bf16.mxu0 %v405
        %431 = vmatpush1.bf16.msra.mxu0 %v404
        %432 = vmatprep.subr.bf16.mxu0 0
        %433 = vmatpush2.bf16.msra.mxu0 0
        %434 = vmatprep.subr.bf16.mxu0 0
        %435 = vmatpush2.bf16.msra.mxu0 0
        %436 = vmatprep.subr.bf16.mxu0 0
        %437 = vmatpush2.bf16.msra.mxu0 0
        %438 = vmatprep.subr.bf16.mxu0 0
        %439 = vmatpush2.bf16.msra.mxu0 0
        %440 = vmatprep.subr.bf16.mxu0 0
        %441 = vmatpush2.bf16.msra.mxu0 0
        %442 = vmatprep.subr.bf16.mxu0 0
        %443 = vmatpush2.bf16.msra.mxu0 0
        %444 = vmatprep.subr.bf16.mxu0 0
        %445 = vmatpush2.bf16.msra.mxu0 0
        %446 = vmatprep.subr.bf16.mxu0 0
        %447 = vmatpush2.bf16.msra.mxu0 0
        %448 = vmatprep.mubr.bf16.mxu0 0
        %449 = vmatmul.mubr.bf16.gmra.mxu0 %v414
        %v450 = vpop.f32.mrf.mxu0
        %v451 = vadd.f32 0.0, %v450
        %v452 = vpop.f32.mrf.mxu0
        %v453 = vadd.f32 0.0, %v452
        %v454 = vpop.f32.mrf.mxu0
        %v455 = vadd.f32 0.0, %v454
        %v456 = vpop.f32.mrf.mxu0
        %v457 = vadd.f32 0.0, %v456
        %458 = vdwg.mxu0
        %459 = vmatprep.subr.bf16.mxu0 0
        %460 = vmatpush1.bf16.msra.mxu0 0
        %461 = vmatprep.subr.bf16.mxu0 0
        %462 = vmatpush1.bf16.msra.mxu0 0
        %463 = vmatprep.subr.bf16.mxu0 0
        %464 = vmatpush1.bf16.msra.mxu0 0
        %465 = vmatprep.subr.bf16.mxu0 0
        %466 = vmatpush1.bf16.msra.mxu0 0
        %467 = vmatprep.subr.bf16.mxu0 0
        %468 = vmatpush1.bf16.msra.mxu0 0
        %469 = vmatprep.subr.bf16.mxu0 0
        %470 = vmatpush1.bf16.msra.mxu0 0
        %471 = vmatprep.subr.bf16.mxu0 0
        %472 = vmatpush1.bf16.msra.mxu0 0
        %473 = vmatprep.subr.bf16.mxu0 %v407
        %474 = vmatpush1.bf16.msra.mxu0 %v406
        %475 = vmatprep.subr.bf16.mxu0 0
        %476 = vmatpush2.bf16.msra.mxu0 0
        %477 = vmatprep.subr.bf16.mxu0 0
        %478 = vmatpush2.bf16.msra.mxu0 0
        %479 = vmatprep.subr.bf16.mxu0 0
        %480 = vmatpush2.bf16.msra.mxu0 0
        %481 = vmatprep.subr.bf16.mxu0 0
        %482 = vmatpush2.bf16.msra.mxu0 0
        %483 = vmatprep.subr.bf16.mxu0 0
        %484 = vmatpush2.bf16.msra.mxu0 0
        %485 = vmatprep.subr.bf16.mxu0 0
        %486 = vmatpush2.bf16.msra.mxu0 0
        %487 = vmatprep.subr.bf16.mxu0 0
        %488 = vmatpush2.bf16.msra.mxu0 0
        %489 = vmatprep.subr.bf16.mxu0 0
        %490 = vmatpush2.bf16.msra.mxu0 0
        %491 = vmatprep.mubr.bf16.mxu0 0
        %492 = vmatmul.mubr.bf16.gmra.mxu0 %v414
        %v493 = vpop.f32.mrf.mxu0
        %v494 = vadd.f32 0.0, %v493
        %v495 = vpop.f32.mrf.mxu0
        %v496 = vadd.f32 0.0, %v495
        %v497 = vpop.f32.mrf.mxu0
        %v498 = vadd.f32 0.0, %v497
        %v499 = vpop.f32.mrf.mxu0
        %v500 = vadd.f32 0.0, %v499
        %501 = vdwg.mxu0
        %v502 = vpack.c.bf16 %v455, %v451
        %v503 = vpack.c.bf16 %v457, %v453
        %v504 = vpack.c.bf16 %v498, %v494
        %v505 = vpack.c.bf16 %v500, %v496
        %v506 = vld [vmem:[%s347] sm:$0xf]
        %v507 = vld [vmem:[%s347 + $0x4] sm:$0xf]
        %v508 = vld [vmem:[%s347 + $0x8] sm:$0xf]
        %v509 = vld [vmem:[%s347 + $0xc] sm:$0xf]
        %v510 = vld [vmem:[%s347 + $0x10] sm:$0xf]
        %v511 = vld [vmem:[%s347 + $0x14] sm:$0xf]
        %v512 = vld [vmem:[%s347 + $0x18] sm:$0xf]
        %v513 = vld [vmem:[%s347 + $0x1c] sm:$0xf]
        %v514 = vld [vmem:[%s347 + $0x20] sm:$0xf]
        %v515 = vld [vmem:[%s347 + $0x24] sm:$0xf]
        %v516 = vld [vmem:[%s347 + $0x28] sm:$0xf]
        %v517 = vld [vmem:[%s347 + $0x2c] sm:$0xf]
        %v518 = vld [vmem:[%s347 + $0x30] sm:$0xf]
        %v519 = vld [vmem:[%s347 + $0x34] sm:$0xf]
        %v520 = vld [vmem:[%s347 + $0x38] sm:$0xf]
        %v521 = vld [vmem:[%s347 + $0x3c] sm:$0xf]
        %v522 = vld [vmem:[%s347 + $0x40] sm:$0xf]
        %v523 = vld [vmem:[%s347 + $0x44] sm:$0xf]
        %v524 = vld [vmem:[%s347 + $0x48] sm:$0xf]
        %v525 = vld [vmem:[%s347 + $0x4c] sm:$0xf]
        %v526 = vld [vmem:[%s347 + $0x50] sm:$0xf]
        %v527 = vld [vmem:[%s347 + $0x54] sm:$0xf]
        %v528 = vld [vmem:[%s347 + $0x58] sm:$0xf]
        %v529 = vld [vmem:[%s347 + $0x5c] sm:$0xf]
        %v530 = vld [vmem:[%s347 + $0x60] sm:$0xf]
        %v531 = vld [vmem:[%s347 + $0x64] sm:$0xf]
        %v532 = vld [vmem:[%s347 + $0x68] sm:$0xf]
        %v533 = vld [vmem:[%s347 + $0x6c] sm:$0xf]
        %v534 = vld [vmem:[%s347 + $0x70] sm:$0xf]
        %v535 = vld [vmem:[%s347 + $0x74] sm:$0xf]
        %v536 = vld [vmem:[%s347 + $0x78] sm:$0xf]
        %v537 = vld [vmem:[%s347 + $0x7c] sm:$0xf]
        %v570 = vunpack.c.l.b16 %v506
        %v571 = vunpack.c.l.b16 %v507
        %v572 = vunpack.c.l.b16 %v508
        %v573 = vunpack.c.l.b16 %v509
        %v574 = vunpack.c.l.b16 %v510
        %v575 = vunpack.c.l.b16 %v511
        %v576 = vunpack.c.l.b16 %v512
        %v577 = vunpack.c.l.b16 %v513
        %v578 = vunpack.c.l.b16 %v514
        %v579 = vunpack.c.l.b16 %v515
        %v580 = vunpack.c.l.b16 %v516
        %v581 = vunpack.c.l.b16 %v517
        %v582 = vunpack.c.l.b16 %v518
        %v583 = vunpack.c.l.b16 %v519
        %v584 = vunpack.c.l.b16 %v520
        %v585 = vunpack.c.l.b16 %v521
        %v586 = vunpack.c.l.b16 %v522
        %v587 = vunpack.c.l.b16 %v523
        %v588 = vunpack.c.l.b16 %v524
        %v589 = vunpack.c.l.b16 %v525
        %v590 = vunpack.c.l.b16 %v526
        %v591 = vunpack.c.l.b16 %v527
        %v592 = vunpack.c.l.b16 %v528
        %v593 = vunpack.c.l.b16 %v529
        %v594 = vunpack.c.l.b16 %v530
        %v595 = vunpack.c.l.b16 %v531
        %v596 = vunpack.c.l.b16 %v532
        %v597 = vunpack.c.l.b16 %v533
        %v598 = vunpack.c.l.b16 %v534
        %v599 = vunpack.c.l.b16 %v535
        %v600 = vunpack.c.l.b16 %v536
        %v601 = vunpack.c.l.b16 %v537
        %v602 = vpack.c.b16 %v571, %v570
        %v603 = vpack.c.b16 %v573, %v572
        %v604 = vpack.c.b16 %v575, %v574
        %v605 = vpack.c.b16 %v577, %v576
        %v606 = vpack.c.b16 %v579, %v578
        %v607 = vpack.c.b16 %v581, %v580
        %v608 = vpack.c.b16 %v583, %v582
        %v609 = vpack.c.b16 %v585, %v584
        %v610 = vpack.c.b16 %v587, %v586
        %v611 = vpack.c.b16 %v589, %v588
        %v612 = vpack.c.b16 %v591, %v590
        %v613 = vpack.c.b16 %v593, %v592
        %v614 = vpack.c.b16 %v595, %v594
        %v615 = vpack.c.b16 %v597, %v596
        %v616 = vpack.c.b16 %v599, %v598
        %v617 = vpack.c.b16 %v601, %v600
        %v619 = vsel %vm412, %v602, 0
        %v622 = vsel %vm412, %v603, 0
        %v625 = vsel %vm412, %v604, 0
        %v628 = vsel %vm412, %v605, 0
        %v631 = vsel %vm412, %v606, 0
        %v634 = vsel %vm412, %v607, 0
        %v637 = vsel %vm412, %v608, 0
        %v640 = vsel %vm412, %v609, 0
        %v643 = vsel %vm412, %v610, 0
        %v646 = vsel %vm412, %v611, 0
        %v649 = vsel %vm412, %v612, 0
        %v652 = vsel %vm412, %v613, 0
        %v655 = vsel %vm412, %v614, 0
        %v658 = vsel %vm412, %v615, 0
        %v661 = vsel %vm412, %v616, 0
        %v664 = vsel %vm412, %v617, 0
        %666 = vmatprep.subr.bf16.mxu0 0
        %667 = vmatpush1.bf16.msra.mxu0 0
        %668 = vmatprep.subr.bf16.mxu0 0
        %669 = vmatpush1.bf16.msra.mxu0 0
        %670 = vmatprep.subr.bf16.mxu0 0
        %671 = vmatpush1.bf16.msra.mxu0 0
        %672 = vmatprep.subr.bf16.mxu0 0
        %673 = vmatpush1.bf16.msra.mxu0 0
        %674 = vmatprep.subr.bf16.mxu0 0
        %675 = vmatpush1.bf16.msra.mxu0 0
        %676 = vmatprep.subr.bf16.mxu0 0
        %677 = vmatpush1.bf16.msra.mxu0 0
        %678 = vmatprep.subr.bf16.mxu0 0
        %679 = vmatpush1.bf16.msra.mxu0 0
        %680 = vmatprep.subr.bf16.mxu0 %v503
        %681 = vmatpush1.bf16.msra.mxu0 %v502
        %682 = vmatprep.subr.bf16.mxu0 0
        %683 = vmatpush2.bf16.msra.mxu0 0
        %684 = vmatprep.subr.bf16.mxu0 0
        %685 = vmatpush2.bf16.msra.mxu0 0
        %686 = vmatprep.subr.bf16.mxu0 0
        %687 = vmatpush2.bf16.msra.mxu0 0
        %688 = vmatprep.subr.bf16.mxu0 0
        %689 = vmatpush2.bf16.msra.mxu0 0
        %690 = vmatprep.subr.bf16.mxu0 0
        %691 = vmatpush2.bf16.msra.mxu0 0
        %692 = vmatprep.subr.bf16.mxu0 0
        %693 = vmatpush2.bf16.msra.mxu0 0
        %694 = vmatprep.subr.bf16.mxu0 0
        %695 = vmatpush2.bf16.msra.mxu0 0
        %696 = vmatprep.subr.bf16.mxu0 0
        %697 = vmatpush2.bf16.msra.mxu0 0
        %698 = vmatprep.mubr.bf16.mxu0 0
        %699 = vmatmul.mubr.bf16.gmra.mxu0 %v619
        %v700 = vpop.f32.mrf.mxu0
        %v701 = vadd.f32 0.0, %v700
        %v702 = vpop.f32.mrf.mxu0
        %v703 = vadd.f32 0.0, %v702
        %v704 = vpop.f32.mrf.mxu0
        %v705 = vadd.f32 0.0, %v704
        %v706 = vpop.f32.mrf.mxu0
        %v707 = vadd.f32 0.0, %v706
        %708 = vmatprep.mubr.bf16.mxu0 0
        %709 = vmatmul.mubr.bf16.gmra.mxu0 %v622
        %v710 = vpop.f32.mrf.mxu0
        %v711 = vadd.f32 0.0, %v710
        %v712 = vpop.f32.mrf.mxu0
        %v713 = vadd.f32 0.0, %v712
        %v714 = vpop.f32.mrf.mxu0
        %v715 = vadd.f32 0.0, %v714
        %v716 = vpop.f32.mrf.mxu0
        %v717 = vadd.f32 0.0, %v716
        %718 = vmatprep.mubr.bf16.mxu0 0
        %719 = vmatmul.mubr.bf16.gmra.mxu0 %v625
        %v720 = vpop.f32.mrf.mxu0
        %v721 = vadd.f32 0.0, %v720
        %v722 = vpop.f32.mrf.mxu0
        %v723 = vadd.f32 0.0, %v722
        %v724 = vpop.f32.mrf.mxu0
        %v725 = vadd.f32 0.0, %v724
        %v726 = vpop.f32.mrf.mxu0
        %v727 = vadd.f32 0.0, %v726
        %728 = vmatprep.mubr.bf16.mxu0 0
        %729 = vmatmul.mubr.bf16.gmra.mxu0 %v628
        %v730 = vpop.f32.mrf.mxu0
        %v731 = vadd.f32 0.0, %v730
        %v732 = vpop.f32.mrf.mxu0
        %v733 = vadd.f32 0.0, %v732
        %v734 = vpop.f32.mrf.mxu0
        %v735 = vadd.f32 0.0, %v734
        %v736 = vpop.f32.mrf.mxu0
        %v737 = vadd.f32 0.0, %v736
        %738 = vmatprep.mubr.bf16.mxu0 0
        %739 = vmatmul.mubr.bf16.gmra.mxu0 %v631
        %v740 = vpop.f32.mrf.mxu0
        %v741 = vadd.f32 0.0, %v740
        %v742 = vpop.f32.mrf.mxu0
        %v743 = vadd.f32 0.0, %v742
        %v744 = vpop.f32.mrf.mxu0
        %v745 = vadd.f32 0.0, %v744
        %v746 = vpop.f32.mrf.mxu0
        %v747 = vadd.f32 0.0, %v746
        %748 = vmatprep.mubr.bf16.mxu0 0
        %749 = vmatmul.mubr.bf16.gmra.mxu0 %v634
        %v750 = vpop.f32.mrf.mxu0
        %v751 = vadd.f32 0.0, %v750
        %v752 = vpop.f32.mrf.mxu0
        %v753 = vadd.f32 0.0, %v752
        %v754 = vpop.f32.mrf.mxu0
        %v755 = vadd.f32 0.0, %v754
        %v756 = vpop.f32.mrf.mxu0
        %v757 = vadd.f32 0.0, %v756
        %758 = vmatprep.mubr.bf16.mxu0 0
        %759 = vmatmul.mubr.bf16.gmra.mxu0 %v637
        %v760 = vpop.f32.mrf.mxu0
        %v761 = vadd.f32 0.0, %v760
        %v762 = vpop.f32.mrf.mxu0
        %v763 = vadd.f32 0.0, %v762
        %v764 = vpop.f32.mrf.mxu0
        %v765 = vadd.f32 0.0, %v764
        %v766 = vpop.f32.mrf.mxu0
        %v767 = vadd.f32 0.0, %v766
        %768 = vmatprep.mubr.bf16.mxu0 0
        %769 = vmatmul.mubr.bf16.gmra.mxu0 %v640
        %v770 = vpop.f32.mrf.mxu0
        %v771 = vadd.f32 0.0, %v770
        %v772 = vpop.f32.mrf.mxu0
        %v773 = vadd.f32 0.0, %v772
        %v774 = vpop.f32.mrf.mxu0
        %v775 = vadd.f32 0.0, %v774
        %v776 = vpop.f32.mrf.mxu0
        %v777 = vadd.f32 0.0, %v776
        %778 = vmatprep.mubr.bf16.mxu0 0
        %779 = vmatmul.mubr.bf16.gmra.mxu0 %v643
        %v780 = vpop.f32.mrf.mxu0
        %v781 = vadd.f32 0.0, %v780
        %v782 = vpop.f32.mrf.mxu0
        %v783 = vadd.f32 0.0, %v782
        %v784 = vpop.f32.mrf.mxu0
        %v785 = vadd.f32 0.0, %v784
        %v786 = vpop.f32.mrf.mxu0
        %v787 = vadd.f32 0.0, %v786
        %788 = vmatprep.mubr.bf16.mxu0 0
        %789 = vmatmul.mubr.bf16.gmra.mxu0 %v646
        %v790 = vpop.f32.mrf.mxu0
        %v791 = vadd.f32 0.0, %v790
        %v792 = vpop.f32.mrf.mxu0
        %v793 = vadd.f32 0.0, %v792
        %v794 = vpop.f32.mrf.mxu0
        %v795 = vadd.f32 0.0, %v794
        %v796 = vpop.f32.mrf.mxu0
        %v797 = vadd.f32 0.0, %v796
        %798 = vmatprep.mubr.bf16.mxu0 0
        %799 = vmatmul.mubr.bf16.gmra.mxu0 %v649
        %v800 = vpop.f32.mrf.mxu0
        %v801 = vadd.f32 0.0, %v800
        %v802 = vpop.f32.mrf.mxu0
        %v803 = vadd.f32 0.0, %v802
        %v804 = vpop.f32.mrf.mxu0
        %v805 = vadd.f32 0.0, %v804
        %v806 = vpop.f32.mrf.mxu0
        %v807 = vadd.f32 0.0, %v806
        %808 = vmatprep.mubr.bf16.mxu0 0
        %809 = vmatmul.mubr.bf16.gmra.mxu0 %v652
        %v810 = vpop.f32.mrf.mxu0
        %v811 = vadd.f32 0.0, %v810
        %v812 = vpop.f32.mrf.mxu0
        %v813 = vadd.f32 0.0, %v812
        %v814 = vpop.f32.mrf.mxu0
        %v815 = vadd.f32 0.0, %v814
        %v816 = vpop.f32.mrf.mxu0
        %v817 = vadd.f32 0.0, %v816
        %818 = vmatprep.mubr.bf16.mxu0 0
        %819 = vmatmul.mubr.bf16.gmra.mxu0 %v655
        %v820 = vpop.f32.mrf.mxu0
        %v821 = vadd.f32 0.0, %v820
        %v822 = vpop.f32.mrf.mxu0
        %v823 = vadd.f32 0.0, %v822
        %v824 = vpop.f32.mrf.mxu0
        %v825 = vadd.f32 0.0, %v824
        %v826 = vpop.f32.mrf.mxu0
        %v827 = vadd.f32 0.0, %v826
        %828 = vmatprep.mubr.bf16.mxu0 0
        %829 = vmatmul.mubr.bf16.gmra.mxu0 %v658
        %v830 = vpop.f32.mrf.mxu0
        %v831 = vadd.f32 0.0, %v830
        %v832 = vpop.f32.mrf.mxu0
        %v833 = vadd.f32 0.0, %v832
        %v834 = vpop.f32.mrf.mxu0
        %v835 = vadd.f32 0.0, %v834
        %v836 = vpop.f32.mrf.mxu0
        %v837 = vadd.f32 0.0, %v836
        %838 = vmatprep.mubr.bf16.mxu0 0
        %839 = vmatmul.mubr.bf16.gmra.mxu0 %v661
        %v840 = vpop.f32.mrf.mxu0
        %v841 = vadd.f32 0.0, %v840
        %v842 = vpop.f32.mrf.mxu0
        %v843 = vadd.f32 0.0, %v842
        %v844 = vpop.f32.mrf.mxu0
        %v845 = vadd.f32 0.0, %v844
        %v846 = vpop.f32.mrf.mxu0
        %v847 = vadd.f32 0.0, %v846
        %848 = vmatprep.mubr.bf16.mxu0 0
        %849 = vmatmul.mubr.bf16.gmra.mxu0 %v664
        %v850 = vpop.f32.mrf.mxu0
        %v851 = vadd.f32 0.0, %v850
        %v852 = vpop.f32.mrf.mxu0
        %v853 = vadd.f32 0.0, %v852
        %v854 = vpop.f32.mrf.mxu0
        %v855 = vadd.f32 0.0, %v854
        %v856 = vpop.f32.mrf.mxu0
        %v857 = vadd.f32 0.0, %v856
        %858 = vdwg.mxu0
        %v859 = vld [vmem:[%s353] sm:$0xf]
        %v860 = vld [vmem:[%s353 + $0x4] sm:$0xf]
        %v861 = vld [vmem:[%s353 + $0x8] sm:$0xf]
        %v862 = vld [vmem:[%s353 + $0xc] sm:$0xf]
        %v863 = vld [vmem:[%s353 + $0x10] sm:$0xf]
        %v864 = vld [vmem:[%s353 + $0x14] sm:$0xf]
        %v865 = vld [vmem:[%s353 + $0x18] sm:$0xf]
        %v866 = vld [vmem:[%s353 + $0x1c] sm:$0xf]
        %v867 = vld [vmem:[%s353 + $0x20] sm:$0xf]
        %v868 = vld [vmem:[%s353 + $0x24] sm:$0xf]
        %v869 = vld [vmem:[%s353 + $0x28] sm:$0xf]
        %v870 = vld [vmem:[%s353 + $0x2c] sm:$0xf]
        %v871 = vld [vmem:[%s353 + $0x30] sm:$0xf]
        %v872 = vld [vmem:[%s353 + $0x34] sm:$0xf]
        %v873 = vld [vmem:[%s353 + $0x38] sm:$0xf]
        %v874 = vld [vmem:[%s353 + $0x3c] sm:$0xf]
        %v875 = vld [vmem:[%s353 + $0x40] sm:$0xf]
        %v876 = vld [vmem:[%s353 + $0x44] sm:$0xf]
        %v877 = vld [vmem:[%s353 + $0x48] sm:$0xf]
        %v878 = vld [vmem:[%s353 + $0x4c] sm:$0xf]
        %v879 = vld [vmem:[%s353 + $0x50] sm:$0xf]
        %v880 = vld [vmem:[%s353 + $0x54] sm:$0xf]
        %v881 = vld [vmem:[%s353 + $0x58] sm:$0xf]
        %v882 = vld [vmem:[%s353 + $0x5c] sm:$0xf]
        %v883 = vld [vmem:[%s353 + $0x60] sm:$0xf]
        %v884 = vld [vmem:[%s353 + $0x64] sm:$0xf]
        %v885 = vld [vmem:[%s353 + $0x68] sm:$0xf]
        %v886 = vld [vmem:[%s353 + $0x6c] sm:$0xf]
        %v887 = vld [vmem:[%s353 + $0x70] sm:$0xf]
        %v888 = vld [vmem:[%s353 + $0x74] sm:$0xf]
        %v889 = vld [vmem:[%s353 + $0x78] sm:$0xf]
        %v890 = vld [vmem:[%s353 + $0x7c] sm:$0xf]
        %v923 = vunpack.c.l.b16 %v859
        %v924 = vunpack.c.l.b16 %v860
        %v925 = vunpack.c.l.b16 %v861
        %v926 = vunpack.c.l.b16 %v862
        %v927 = vunpack.c.l.b16 %v863
        %v928 = vunpack.c.l.b16 %v864
        %v929 = vunpack.c.l.b16 %v865
        %v930 = vunpack.c.l.b16 %v866
        %v931 = vunpack.c.l.b16 %v867
        %v932 = vunpack.c.l.b16 %v868
        %v933 = vunpack.c.l.b16 %v869
        %v934 = vunpack.c.l.b16 %v870
        %v935 = vunpack.c.l.b16 %v871
        %v936 = vunpack.c.l.b16 %v872
        %v937 = vunpack.c.l.b16 %v873
        %v938 = vunpack.c.l.b16 %v874
        %v939 = vunpack.c.l.b16 %v875
        %v940 = vunpack.c.l.b16 %v876
        %v941 = vunpack.c.l.b16 %v877
        %v942 = vunpack.c.l.b16 %v878
        %v943 = vunpack.c.l.b16 %v879
        %v944 = vunpack.c.l.b16 %v880
        %v945 = vunpack.c.l.b16 %v881
        %v946 = vunpack.c.l.b16 %v882
        %v947 = vunpack.c.l.b16 %v883
        %v948 = vunpack.c.l.b16 %v884
        %v949 = vunpack.c.l.b16 %v885
        %v950 = vunpack.c.l.b16 %v886
        %v951 = vunpack.c.l.b16 %v887
        %v952 = vunpack.c.l.b16 %v888
        %v953 = vunpack.c.l.b16 %v889
        %v954 = vunpack.c.l.b16 %v890
        %v955 = vpack.c.b16 %v924, %v923
        %v956 = vpack.c.b16 %v926, %v925
        %v957 = vpack.c.b16 %v928, %v927
        %v958 = vpack.c.b16 %v930, %v929
        %v959 = vpack.c.b16 %v932, %v931
        %v960 = vpack.c.b16 %v934, %v933
        %v961 = vpack.c.b16 %v936, %v935
        %v962 = vpack.c.b16 %v938, %v937
        %v963 = vpack.c.b16 %v940, %v939
        %v964 = vpack.c.b16 %v942, %v941
        %v965 = vpack.c.b16 %v944, %v943
        %v966 = vpack.c.b16 %v946, %v945
        %v967 = vpack.c.b16 %v948, %v947
        %v968 = vpack.c.b16 %v950, %v949
        %v969 = vpack.c.b16 %v952, %v951
        %v970 = vpack.c.b16 %v954, %v953
        %v972 = vsel %vm412, %v955, 0
        %v975 = vsel %vm412, %v956, 0
        %v978 = vsel %vm412, %v957, 0
        %v981 = vsel %vm412, %v958, 0
        %v984 = vsel %vm412, %v959, 0
        %v987 = vsel %vm412, %v960, 0
        %v990 = vsel %vm412, %v961, 0
        %v993 = vsel %vm412, %v962, 0
        %v996 = vsel %vm412, %v963, 0
        %v999 = vsel %vm412, %v964, 0
        %v1002 = vsel %vm412, %v965, 0
        %v1005 = vsel %vm412, %v966, 0
        %v1008 = vsel %vm412, %v967, 0
        %v1011 = vsel %vm412, %v968, 0
        %v1014 = vsel %vm412, %v969, 0
        %v1017 = vsel %vm412, %v970, 0
        %1019 = vmatprep.subr.bf16.mxu0 0
        %1020 = vmatpush1.bf16.msra.mxu0 0
        %1021 = vmatprep.subr.bf16.mxu0 0
        %1022 = vmatpush1.bf16.msra.mxu0 0
        %1023 = vmatprep.subr.bf16.mxu0 0
        %1024 = vmatpush1.bf16.msra.mxu0 0
        %1025 = vmatprep.subr.bf16.mxu0 0
        %1026 = vmatpush1.bf16.msra.mxu0 0
        %1027 = vmatprep.subr.bf16.mxu0 0
        %1028 = vmatpush1.bf16.msra.mxu0 0
        %1029 = vmatprep.subr.bf16.mxu0 0
        %1030 = vmatpush1.bf16.msra.mxu0 0
        %1031 = vmatprep.subr.bf16.mxu0 0
        %1032 = vmatpush1.bf16.msra.mxu0 0
        %1033 = vmatprep.subr.bf16.mxu0 %v505
        %1034 = vmatpush1.bf16.msra.mxu0 %v504
        %1035 = vmatprep.subr.bf16.mxu0 0
        %1036 = vmatpush2.bf16.msra.mxu0 0
        %1037 = vmatprep.subr.bf16.mxu0 0
        %1038 = vmatpush2.bf16.msra.mxu0 0
        %1039 = vmatprep.subr.bf16.mxu0 0
        %1040 = vmatpush2.bf16.msra.mxu0 0
        %1041 = vmatprep.subr.bf16.mxu0 0
        %1042 = vmatpush2.bf16.msra.mxu0 0
        %1043 = vmatprep.subr.bf16.mxu0 0
        %1044 = vmatpush2.bf16.msra.mxu0 0
        %1045 = vmatprep.subr.bf16.mxu0 0
        %1046 = vmatpush2.bf16.msra.mxu0 0
        %1047 = vmatprep.subr.bf16.mxu0 0
        %1048 = vmatpush2.bf16.msra.mxu0 0
        %1049 = vmatprep.subr.bf16.mxu0 0
        %1050 = vmatpush2.bf16.msra.mxu0 0
        %1051 = vmatprep.mubr.bf16.mxu0 0
        %1052 = vmatmul.mubr.bf16.gmra.mxu0 %v972
        %v1053 = vpop.f32.mrf.mxu0
        %v1054 = vadd.f32 0.0, %v1053
        %v1055 = vpop.f32.mrf.mxu0
        %v1056 = vadd.f32 0.0, %v1055
        %v1057 = vpop.f32.mrf.mxu0
        %v1058 = vadd.f32 0.0, %v1057
        %v1059 = vpop.f32.mrf.mxu0
        %v1060 = vadd.f32 0.0, %v1059
        %1061 = vmatprep.mubr.bf16.mxu0 0
        %1062 = vmatmul.mubr.bf16.gmra.mxu0 %v975
        %v1063 = vpop.f32.mrf.mxu0
        %v1064 = vadd.f32 0.0, %v1063
        %v1065 = vpop.f32.mrf.mxu0
        %v1066 = vadd.f32 0.0, %v1065
        %v1067 = vpop.f32.mrf.mxu0
        %v1068 = vadd.f32 0.0, %v1067
        %v1069 = vpop.f32.mrf.mxu0
        %v1070 = vadd.f32 0.0, %v1069
        %1071 = vmatprep.mubr.bf16.mxu0 0
        %1072 = vmatmul.mubr.bf16.gmra.mxu0 %v978
        %v1073 = vpop.f32.mrf.mxu0
        %v1074 = vadd.f32 0.0, %v1073
        %v1075 = vpop.f32.mrf.mxu0
        %v1076 = vadd.f32 0.0, %v1075
        %v1077 = vpop.f32.mrf.mxu0
        %v1078 = vadd.f32 0.0, %v1077
        %v1079 = vpop.f32.mrf.mxu0
        %v1080 = vadd.f32 0.0, %v1079
        %1081 = vmatprep.mubr.bf16.mxu0 0
        %1082 = vmatmul.mubr.bf16.gmra.mxu0 %v981
        %v1083 = vpop.f32.mrf.mxu0
        %v1084 = vadd.f32 0.0, %v1083
        %v1085 = vpop.f32.mrf.mxu0
        %v1086 = vadd.f32 0.0, %v1085
        %v1087 = vpop.f32.mrf.mxu0
        %v1088 = vadd.f32 0.0, %v1087
        %v1089 = vpop.f32.mrf.mxu0
        %v1090 = vadd.f32 0.0, %v1089
        %1091 = vmatprep.mubr.bf16.mxu0 0
        %1092 = vmatmul.mubr.bf16.gmra.mxu0 %v984
        %v1093 = vpop.f32.mrf.mxu0
        %v1094 = vadd.f32 0.0, %v1093
        %v1095 = vpop.f32.mrf.mxu0
        %v1096 = vadd.f32 0.0, %v1095
        %v1097 = vpop.f32.mrf.mxu0
        %v1098 = vadd.f32 0.0, %v1097
        %v1099 = vpop.f32.mrf.mxu0
        %v1100 = vadd.f32 0.0, %v1099
        %1101 = vmatprep.mubr.bf16.mxu0 0
        %1102 = vmatmul.mubr.bf16.gmra.mxu0 %v987
        %v1103 = vpop.f32.mrf.mxu0
        %v1104 = vadd.f32 0.0, %v1103
        %v1105 = vpop.f32.mrf.mxu0
        %v1106 = vadd.f32 0.0, %v1105
        %v1107 = vpop.f32.mrf.mxu0
        %v1108 = vadd.f32 0.0, %v1107
        %v1109 = vpop.f32.mrf.mxu0
        %v1110 = vadd.f32 0.0, %v1109
        %1111 = vmatprep.mubr.bf16.mxu0 0
        %1112 = vmatmul.mubr.bf16.gmra.mxu0 %v990
        %v1113 = vpop.f32.mrf.mxu0
        %v1114 = vadd.f32 0.0, %v1113
        %v1115 = vpop.f32.mrf.mxu0
        %v1116 = vadd.f32 0.0, %v1115
        %v1117 = vpop.f32.mrf.mxu0
        %v1118 = vadd.f32 0.0, %v1117
        %v1119 = vpop.f32.mrf.mxu0
        %v1120 = vadd.f32 0.0, %v1119
        %1121 = vmatprep.mubr.bf16.mxu0 0
        %1122 = vmatmul.mubr.bf16.gmra.mxu0 %v993
        %v1123 = vpop.f32.mrf.mxu0
        %v1124 = vadd.f32 0.0, %v1123
        %v1125 = vpop.f32.mrf.mxu0
        %v1126 = vadd.f32 0.0, %v1125
        %v1127 = vpop.f32.mrf.mxu0
        %v1128 = vadd.f32 0.0, %v1127
        %v1129 = vpop.f32.mrf.mxu0
        %v1130 = vadd.f32 0.0, %v1129
        %1131 = vmatprep.mubr.bf16.mxu0 0
        %1132 = vmatmul.mubr.bf16.gmra.mxu0 %v996
        %v1133 = vpop.f32.mrf.mxu0
        %v1134 = vadd.f32 0.0, %v1133
        %v1135 = vpop.f32.mrf.mxu0
        %v1136 = vadd.f32 0.0, %v1135
        %v1137 = vpop.f32.mrf.mxu0
        %v1138 = vadd.f32 0.0, %v1137
        %v1139 = vpop.f32.mrf.mxu0
        %v1140 = vadd.f32 0.0, %v1139
        %1141 = vmatprep.mubr.bf16.mxu0 0
        %1142 = vmatmul.mubr.bf16.gmra.mxu0 %v999
        %v1143 = vpop.f32.mrf.mxu0
        %v1144 = vadd.f32 0.0, %v1143
        %v1145 = vpop.f32.mrf.mxu0
        %v1146 = vadd.f32 0.0, %v1145
        %v1147 = vpop.f32.mrf.mxu0
        %v1148 = vadd.f32 0.0, %v1147
        %v1149 = vpop.f32.mrf.mxu0
        %v1150 = vadd.f32 0.0, %v1149
        %1151 = vmatprep.mubr.bf16.mxu0 0
        %1152 = vmatmul.mubr.bf16.gmra.mxu0 %v1002
        %v1153 = vpop.f32.mrf.mxu0
        %v1154 = vadd.f32 0.0, %v1153
        %v1155 = vpop.f32.mrf.mxu0
        %v1156 = vadd.f32 0.0, %v1155
        %v1157 = vpop.f32.mrf.mxu0
        %v1158 = vadd.f32 0.0, %v1157
        %v1159 = vpop.f32.mrf.mxu0
        %v1160 = vadd.f32 0.0, %v1159
        %1161 = vmatprep.mubr.bf16.mxu0 0
        %1162 = vmatmul.mubr.bf16.gmra.mxu0 %v1005
        %v1163 = vpop.f32.mrf.mxu0
        %v1164 = vadd.f32 0.0, %v1163
        %v1165 = vpop.f32.mrf.mxu0
        %v1166 = vadd.f32 0.0, %v1165
        %v1167 = vpop.f32.mrf.mxu0
        %v1168 = vadd.f32 0.0, %v1167
        %v1169 = vpop.f32.mrf.mxu0
        %v1170 = vadd.f32 0.0, %v1169
        %1171 = vmatprep.mubr.bf16.mxu0 0
        %1172 = vmatmul.mubr.bf16.gmra.mxu0 %v1008
        %v1173 = vpop.f32.mrf.mxu0
        %v1174 = vadd.f32 0.0, %v1173
        %v1175 = vpop.f32.mrf.mxu0
        %v1176 = vadd.f32 0.0, %v1175
        %v1177 = vpop.f32.mrf.mxu0
        %v1178 = vadd.f32 0.0, %v1177
        %v1179 = vpop.f32.mrf.mxu0
        %v1180 = vadd.f32 0.0, %v1179
        %1181 = vmatprep.mubr.bf16.mxu0 0
        %1182 = vmatmul.mubr.bf16.gmra.mxu0 %v1011
        %v1183 = vpop.f32.mrf.mxu0
        %v1184 = vadd.f32 0.0, %v1183
        %v1185 = vpop.f32.mrf.mxu0
        %v1186 = vadd.f32 0.0, %v1185
        %v1187 = vpop.f32.mrf.mxu0
        %v1188 = vadd.f32 0.0, %v1187
        %v1189 = vpop.f32.mrf.mxu0
        %v1190 = vadd.f32 0.0, %v1189
        %1191 = vmatprep.mubr.bf16.mxu0 0
        %1192 = vmatmul.mubr.bf16.gmra.mxu0 %v1014
        %v1193 = vpop.f32.mrf.mxu0
        %v1194 = vadd.f32 0.0, %v1193
        %v1195 = vpop.f32.mrf.mxu0
        %v1196 = vadd.f32 0.0, %v1195
        %v1197 = vpop.f32.mrf.mxu0
        %v1198 = vadd.f32 0.0, %v1197
        %v1199 = vpop.f32.mrf.mxu0
        %v1200 = vadd.f32 0.0, %v1199
        %1201 = vmatprep.mubr.bf16.mxu0 0
        %1202 = vmatmul.mubr.bf16.gmra.mxu0 %v1017
        %v1203 = vpop.f32.mrf.mxu0
        %v1204 = vadd.f32 0.0, %v1203
        %v1205 = vpop.f32.mrf.mxu0
        %v1206 = vadd.f32 0.0, %v1205
        %v1207 = vpop.f32.mrf.mxu0
        %v1208 = vadd.f32 0.0, %v1207
        %v1209 = vpop.f32.mrf.mxu0
        %v1210 = vadd.f32 0.0, %v1209
        %1211 = vdwg.mxu0
        %v1212 = vmul.f32 %v701, %v701
        %v1213 = vmul.f32 %v703, %v703
        %v1214 = vmul.f32 %v705, %v705
        %v1215 = vmul.f32 %v707, %v707
        %v1216 = vmul.f32 %v711, %v711
        %v1217 = vmul.f32 %v713, %v713
        %v1218 = vmul.f32 %v715, %v715
        %v1219 = vmul.f32 %v717, %v717
        %v1220 = vmul.f32 %v721, %v721
        %v1221 = vmul.f32 %v723, %v723
        %v1222 = vmul.f32 %v725, %v725
        %v1223 = vmul.f32 %v727, %v727
        %v1224 = vmul.f32 %v731, %v731
        %v1225 = vmul.f32 %v733, %v733
        %v1226 = vmul.f32 %v735, %v735
        %v1227 = vmul.f32 %v737, %v737
        %v1228 = vmul.f32 %v741, %v741
        %v1229 = vmul.f32 %v743, %v743
        %v1230 = vmul.f32 %v745, %v745
        %v1231 = vmul.f32 %v747, %v747
        %v1232 = vmul.f32 %v751, %v751
        %v1233 = vmul.f32 %v753, %v753
        %v1234 = vmul.f32 %v755, %v755
        %v1235 = vmul.f32 %v757, %v757
        %v1236 = vmul.f32 %v761, %v761
        %v1237 = vmul.f32 %v763, %v763
        %v1238 = vmul.f32 %v765, %v765
        %v1239 = vmul.f32 %v767, %v767
        %v1240 = vmul.f32 %v771, %v771
        %v1241 = vmul.f32 %v773, %v773
        %v1242 = vmul.f32 %v775, %v775
        %v1243 = vmul.f32 %v777, %v777
        %v1244 = vmul.f32 %v781, %v781
        %v1245 = vmul.f32 %v783, %v783
        %v1246 = vmul.f32 %v785, %v785
        %v1247 = vmul.f32 %v787, %v787
        %v1248 = vmul.f32 %v791, %v791
        %v1249 = vmul.f32 %v793, %v793
        %v1250 = vmul.f32 %v795, %v795
        %v1251 = vmul.f32 %v797, %v797
        %v1252 = vmul.f32 %v801, %v801
        %v1253 = vmul.f32 %v803, %v803
        %v1254 = vmul.f32 %v805, %v805
        %v1255 = vmul.f32 %v807, %v807
        %v1256 = vmul.f32 %v811, %v811
        %v1257 = vmul.f32 %v813, %v813
        %v1258 = vmul.f32 %v815, %v815
        %v1259 = vmul.f32 %v817, %v817
        %v1260 = vmul.f32 %v821, %v821
        %v1261 = vmul.f32 %v823, %v823
        %v1262 = vmul.f32 %v825, %v825
        %v1263 = vmul.f32 %v827, %v827
        %v1264 = vmul.f32 %v831, %v831
        %v1265 = vmul.f32 %v833, %v833
        %v1266 = vmul.f32 %v835, %v835
        %v1267 = vmul.f32 %v837, %v837
        %v1268 = vmul.f32 %v841, %v841
        %v1269 = vmul.f32 %v843, %v843
        %v1270 = vmul.f32 %v845, %v845
        %v1271 = vmul.f32 %v847, %v847
        %v1272 = vmul.f32 %v851, %v851
        %v1273 = vmul.f32 %v853, %v853
        %v1274 = vmul.f32 %v855, %v855
        %v1275 = vmul.f32 %v857, %v857
        %v1276 = vmul.f32 %v1054, %v1054
        %v1277 = vmul.f32 %v1056, %v1056
        %v1278 = vmul.f32 %v1058, %v1058
        %v1279 = vmul.f32 %v1060, %v1060
        %v1280 = vmul.f32 %v1064, %v1064
        %v1281 = vmul.f32 %v1066, %v1066
        %v1282 = vmul.f32 %v1068, %v1068
        %v1283 = vmul.f32 %v1070, %v1070
        %v1284 = vmul.f32 %v1074, %v1074
        %v1285 = vmul.f32 %v1076, %v1076
        %v1286 = vmul.f32 %v1078, %v1078
        %v1287 = vmul.f32 %v1080, %v1080
        %v1288 = vmul.f32 %v1084, %v1084
        %v1289 = vmul.f32 %v1086, %v1086
        %v1290 = vmul.f32 %v1088, %v1088
        %v1291 = vmul.f32 %v1090, %v1090
        %v1292 = vmul.f32 %v1094, %v1094
        %v1293 = vmul.f32 %v1096, %v1096
        %v1294 = vmul.f32 %v1098, %v1098
        %v1295 = vmul.f32 %v1100, %v1100
        %v1296 = vmul.f32 %v1104, %v1104
        %v1297 = vmul.f32 %v1106, %v1106
        %v1298 = vmul.f32 %v1108, %v1108
        %v1299 = vmul.f32 %v1110, %v1110
        %v1300 = vmul.f32 %v1114, %v1114
        %v1301 = vmul.f32 %v1116, %v1116
        %v1302 = vmul.f32 %v1118, %v1118
        %v1303 = vmul.f32 %v1120, %v1120
        %v1304 = vmul.f32 %v1124, %v1124
        %v1305 = vmul.f32 %v1126, %v1126
        %v1306 = vmul.f32 %v1128, %v1128
        %v1307 = vmul.f32 %v1130, %v1130
        %v1308 = vmul.f32 %v1134, %v1134
        %v1309 = vmul.f32 %v1136, %v1136
        %v1310 = vmul.f32 %v1138, %v1138
        %v1311 = vmul.f32 %v1140, %v1140
        %v1312 = vmul.f32 %v1144, %v1144
        %v1313 = vmul.f32 %v1146, %v1146
        %v1314 = vmul.f32 %v1148, %v1148
        %v1315 = vmul.f32 %v1150, %v1150
        %v1316 = vmul.f32 %v1154, %v1154
        %v1317 = vmul.f32 %v1156, %v1156
        %v1318 = vmul.f32 %v1158, %v1158
        %v1319 = vmul.f32 %v1160, %v1160
        %v1320 = vmul.f32 %v1164, %v1164
        %v1321 = vmul.f32 %v1166, %v1166
        %v1322 = vmul.f32 %v1168, %v1168
        %v1323 = vmul.f32 %v1170, %v1170
        %v1324 = vmul.f32 %v1174, %v1174
        %v1325 = vmul.f32 %v1176, %v1176
        %v1326 = vmul.f32 %v1178, %v1178
        %v1327 = vmul.f32 %v1180, %v1180
        %v1328 = vmul.f32 %v1184, %v1184
        %v1329 = vmul.f32 %v1186, %v1186
        %v1330 = vmul.f32 %v1188, %v1188
        %v1331 = vmul.f32 %v1190, %v1190
        %v1332 = vmul.f32 %v1194, %v1194
        %v1333 = vmul.f32 %v1196, %v1196
        %v1334 = vmul.f32 %v1198, %v1198
        %v1335 = vmul.f32 %v1200, %v1200
        %v1336 = vmul.f32 %v1204, %v1204
        %v1337 = vmul.f32 %v1206, %v1206
        %v1338 = vmul.f32 %v1208, %v1208
        %v1339 = vmul.f32 %v1210, %v1210
        %v1340 = vadd.f32 %v1212, %v1276
        %v1341 = vadd.f32 %v1213, %v1277
        %v1342 = vadd.f32 %v1214, %v1278
        %v1343 = vadd.f32 %v1215, %v1279
        %v1344 = vadd.f32 %v1216, %v1280
        %v1345 = vadd.f32 %v1217, %v1281
        %v1346 = vadd.f32 %v1218, %v1282
        %v1347 = vadd.f32 %v1219, %v1283
        %v1348 = vadd.f32 %v1220, %v1284
        %v1349 = vadd.f32 %v1221, %v1285
        %v1350 = vadd.f32 %v1222, %v1286
        %v1351 = vadd.f32 %v1223, %v1287
        %v1352 = vadd.f32 %v1224, %v1288
        %v1353 = vadd.f32 %v1225, %v1289
        %v1354 = vadd.f32 %v1226, %v1290
        %v1355 = vadd.f32 %v1227, %v1291
        %v1356 = vadd.f32 %v1228, %v1292
        %v1357 = vadd.f32 %v1229, %v1293
        %v1358 = vadd.f32 %v1230, %v1294
        %v1359 = vadd.f32 %v1231, %v1295
        %v1360 = vadd.f32 %v1232, %v1296
        %v1361 = vadd.f32 %v1233, %v1297
        %v1362 = vadd.f32 %v1234, %v1298
        %v1363 = vadd.f32 %v1235, %v1299
        %v1364 = vadd.f32 %v1236, %v1300
        %v1365 = vadd.f32 %v1237, %v1301
        %v1366 = vadd.f32 %v1238, %v1302
        %v1367 = vadd.f32 %v1239, %v1303
        %v1368 = vadd.f32 %v1240, %v1304
        %v1369 = vadd.f32 %v1241, %v1305
        %v1370 = vadd.f32 %v1242, %v1306
        %v1371 = vadd.f32 %v1243, %v1307
        %v1372 = vadd.f32 %v1244, %v1308
        %v1373 = vadd.f32 %v1245, %v1309
        %v1374 = vadd.f32 %v1246, %v1310
        %v1375 = vadd.f32 %v1247, %v1311
        %v1376 = vadd.f32 %v1248, %v1312
        %v1377 = vadd.f32 %v1249, %v1313
        %v1378 = vadd.f32 %v1250, %v1314
        %v1379 = vadd.f32 %v1251, %v1315
        %v1380 = vadd.f32 %v1252, %v1316
        %v1381 = vadd.f32 %v1253, %v1317
        %v1382 = vadd.f32 %v1254, %v1318
        %v1383 = vadd.f32 %v1255, %v1319
        %v1384 = vadd.f32 %v1256, %v1320
        %v1385 = vadd.f32 %v1257, %v1321
        %v1386 = vadd.f32 %v1258, %v1322
        %v1387 = vadd.f32 %v1259, %v1323
        %v1388 = vadd.f32 %v1260, %v1324
        %v1389 = vadd.f32 %v1261, %v1325
        %v1390 = vadd.f32 %v1262, %v1326
        %v1391 = vadd.f32 %v1263, %v1327
        %v1392 = vadd.f32 %v1264, %v1328
        %v1393 = vadd.f32 %v1265, %v1329
        %v1394 = vadd.f32 %v1266, %v1330
        %v1395 = vadd.f32 %v1267, %v1331
        %v1396 = vadd.f32 %v1268, %v1332
        %v1397 = vadd.f32 %v1269, %v1333
        %v1398 = vadd.f32 %v1270, %v1334
        %v1399 = vadd.f32 %v1271, %v1335
        %v1400 = vadd.f32 %v1272, %v1336
        %v1401 = vadd.f32 %v1273, %v1337
        %v1402 = vadd.f32 %v1274, %v1338
        %v1403 = vadd.f32 %v1275, %v1339
        %v1404 = vrsqrt.pop %v1340
        %v1405 = vmul.f32 %v1340, %v1404
        %vm1406 = vcmp.eq.f32.partialorder %v1340, inf
        %v1407 = vsel %vm1406, %v1340, %v1405
        %vm1408 = vcmp.eq.f32.partialorder %v1340, 0.0
        %v1409 = vand.u32 %v1340, 2147483648
        %v1410 = vsel %vm1408, %v1409, %v1407
        %v1411 = vrsqrt.pop %v1341
        %v1412 = vmul.f32 %v1341, %v1411
        %vm1413 = vcmp.eq.f32.partialorder %v1341, inf
        %v1414 = vsel %vm1413, %v1341, %v1412
        %vm1415 = vcmp.eq.f32.partialorder %v1341, 0.0
        %v1416 = vand.u32 %v1341, 2147483648
        %v1417 = vsel %vm1415, %v1416, %v1414
        %v1418 = vrsqrt.pop %v1342
        %v1419 = vmul.f32 %v1342, %v1418
        %vm1420 = vcmp.eq.f32.partialorder %v1342, inf
        %v1421 = vsel %vm1420, %v1342, %v1419
        %vm1422 = vcmp.eq.f32.partialorder %v1342, 0.0
        %v1423 = vand.u32 %v1342, 2147483648
        %v1424 = vsel %vm1422, %v1423, %v1421
        %v1425 = vrsqrt.pop %v1343
        %v1426 = vmul.f32 %v1343, %v1425
        %vm1427 = vcmp.eq.f32.partialorder %v1343, inf
        %v1428 = vsel %vm1427, %v1343, %v1426
        %vm1429 = vcmp.eq.f32.partialorder %v1343, 0.0
        %v1430 = vand.u32 %v1343, 2147483648
        %v1431 = vsel %vm1429, %v1430, %v1428
        %v1432 = vrsqrt.pop %v1344
        %v1433 = vmul.f32 %v1344, %v1432
        %vm1434 = vcmp.eq.f32.partialorder %v1344, inf
        %v1435 = vsel %vm1434, %v1344, %v1433
        %vm1436 = vcmp.eq.f32.partialorder %v1344, 0.0
        %v1437 = vand.u32 %v1344, 2147483648
        %v1438 = vsel %vm1436, %v1437, %v1435
        %v1439 = vrsqrt.pop %v1345
        %v1440 = vmul.f32 %v1345, %v1439
        %vm1441 = vcmp.eq.f32.partialorder %v1345, inf
        %v1442 = vsel %vm1441, %v1345, %v1440
        %vm1443 = vcmp.eq.f32.partialorder %v1345, 0.0
        %v1444 = vand.u32 %v1345, 2147483648
        %v1445 = vsel %vm1443, %v1444, %v1442
        %v1446 = vrsqrt.pop %v1346
        %v1447 = vmul.f32 %v1346, %v1446
        %vm1448 = vcmp.eq.f32.partialorder %v1346, inf
        %v1449 = vsel %vm1448, %v1346, %v1447
        %vm1450 = vcmp.eq.f32.partialorder %v1346, 0.0
        %v1451 = vand.u32 %v1346, 2147483648
        %v1452 = vsel %vm1450, %v1451, %v1449
        %v1453 = vrsqrt.pop %v1347
        %v1454 = vmul.f32 %v1347, %v1453
        %vm1455 = vcmp.eq.f32.partialorder %v1347, inf
        %v1456 = vsel %vm1455, %v1347, %v1454
        %vm1457 = vcmp.eq.f32.partialorder %v1347, 0.0
        %v1458 = vand.u32 %v1347, 2147483648
        %v1459 = vsel %vm1457, %v1458, %v1456
        %v1460 = vrsqrt.pop %v1348
        %v1461 = vmul.f32 %v1348, %v1460
        %vm1462 = vcmp.eq.f32.partialorder %v1348, inf
        %v1463 = vsel %vm1462, %v1348, %v1461
        %vm1464 = vcmp.eq.f32.partialorder %v1348, 0.0
        %v1465 = vand.u32 %v1348, 2147483648
        %v1466 = vsel %vm1464, %v1465, %v1463
        %v1467 = vrsqrt.pop %v1349
        %v1468 = vmul.f32 %v1349, %v1467
        %vm1469 = vcmp.eq.f32.partialorder %v1349, inf
        %v1470 = vsel %vm1469, %v1349, %v1468
        %vm1471 = vcmp.eq.f32.partialorder %v1349, 0.0
        %v1472 = vand.u32 %v1349, 2147483648
        %v1473 = vsel %vm1471, %v1472, %v1470
        %v1474 = vrsqrt.pop %v1350
        %v1475 = vmul.f32 %v1350, %v1474
        %vm1476 = vcmp.eq.f32.partialorder %v1350, inf
        %v1477 = vsel %vm1476, %v1350, %v1475
        %vm1478 = vcmp.eq.f32.partialorder %v1350, 0.0
        %v1479 = vand.u32 %v1350, 2147483648
        %v1480 = vsel %vm1478, %v1479, %v1477
        %v1481 = vrsqrt.pop %v1351
        %v1482 = vmul.f32 %v1351, %v1481
        %vm1483 = vcmp.eq.f32.partialorder %v1351, inf
        %v1484 = vsel %vm1483, %v1351, %v1482
        %vm1485 = vcmp.eq.f32.partialorder %v1351, 0.0
        %v1486 = vand.u32 %v1351, 2147483648
        %v1487 = vsel %vm1485, %v1486, %v1484
        %v1488 = vrsqrt.pop %v1352
        %v1489 = vmul.f32 %v1352, %v1488
        %vm1490 = vcmp.eq.f32.partialorder %v1352, inf
        %v1491 = vsel %vm1490, %v1352, %v1489
        %vm1492 = vcmp.eq.f32.partialorder %v1352, 0.0
        %v1493 = vand.u32 %v1352, 2147483648
        %v1494 = vsel %vm1492, %v1493, %v1491
        %v1495 = vrsqrt.pop %v1353
        %v1496 = vmul.f32 %v1353, %v1495
        %vm1497 = vcmp.eq.f32.partialorder %v1353, inf
        %v1498 = vsel %vm1497, %v1353, %v1496
        %vm1499 = vcmp.eq.f32.partialorder %v1353, 0.0
        %v1500 = vand.u32 %v1353, 2147483648
        %v1501 = vsel %vm1499, %v1500, %v1498
        %v1502 = vrsqrt.pop %v1354
        %v1503 = vmul.f32 %v1354, %v1502
        %vm1504 = vcmp.eq.f32.partialorder %v1354, inf
        %v1505 = vsel %vm1504, %v1354, %v1503
        %vm1506 = vcmp.eq.f32.partialorder %v1354, 0.0
        %v1507 = vand.u32 %v1354, 2147483648
        %v1508 = vsel %vm1506, %v1507, %v1505
        %v1509 = vrsqrt.pop %v1355
        %v1510 = vmul.f32 %v1355, %v1509
        %vm1511 = vcmp.eq.f32.partialorder %v1355, inf
        %v1512 = vsel %vm1511, %v1355, %v1510
        %vm1513 = vcmp.eq.f32.partialorder %v1355, 0.0
        %v1514 = vand.u32 %v1355, 2147483648
        %v1515 = vsel %vm1513, %v1514, %v1512
        %v1516 = vrsqrt.pop %v1356
        %v1517 = vmul.f32 %v1356, %v1516
        %vm1518 = vcmp.eq.f32.partialorder %v1356, inf
        %v1519 = vsel %vm1518, %v1356, %v1517
        %vm1520 = vcmp.eq.f32.partialorder %v1356, 0.0
        %v1521 = vand.u32 %v1356, 2147483648
        %v1522 = vsel %vm1520, %v1521, %v1519
        %v1523 = vrsqrt.pop %v1357
        %v1524 = vmul.f32 %v1357, %v1523
        %vm1525 = vcmp.eq.f32.partialorder %v1357, inf
        %v1526 = vsel %vm1525, %v1357, %v1524
        %vm1527 = vcmp.eq.f32.partialorder %v1357, 0.0
        %v1528 = vand.u32 %v1357, 2147483648
        %v1529 = vsel %vm1527, %v1528, %v1526
        %v1530 = vrsqrt.pop %v1358
        %v1531 = vmul.f32 %v1358, %v1530
        %vm1532 = vcmp.eq.f32.partialorder %v1358, inf
        %v1533 = vsel %vm1532, %v1358, %v1531
        %vm1534 = vcmp.eq.f32.partialorder %v1358, 0.0
        %v1535 = vand.u32 %v1358, 2147483648
        %v1536 = vsel %vm1534, %v1535, %v1533
        %v1537 = vrsqrt.pop %v1359
        %v1538 = vmul.f32 %v1359, %v1537
        %vm1539 = vcmp.eq.f32.partialorder %v1359, inf
        %v1540 = vsel %vm1539, %v1359, %v1538
        %vm1541 = vcmp.eq.f32.partialorder %v1359, 0.0
        %v1542 = vand.u32 %v1359, 2147483648
        %v1543 = vsel %vm1541, %v1542, %v1540
        %v1544 = vrsqrt.pop %v1360
        %v1545 = vmul.f32 %v1360, %v1544
        %vm1546 = vcmp.eq.f32.partialorder %v1360, inf
        %v1547 = vsel %vm1546, %v1360, %v1545
        %vm1548 = vcmp.eq.f32.partialorder %v1360, 0.0
        %v1549 = vand.u32 %v1360, 2147483648
        %v1550 = vsel %vm1548, %v1549, %v1547
        %v1551 = vrsqrt.pop %v1361
        %v1552 = vmul.f32 %v1361, %v1551
        %vm1553 = vcmp.eq.f32.partialorder %v1361, inf
        %v1554 = vsel %vm1553, %v1361, %v1552
        %vm1555 = vcmp.eq.f32.partialorder %v1361, 0.0
        %v1556 = vand.u32 %v1361, 2147483648
        %v1557 = vsel %vm1555, %v1556, %v1554
        %v1558 = vrsqrt.pop %v1362
        %v1559 = vmul.f32 %v1362, %v1558
        %vm1560 = vcmp.eq.f32.partialorder %v1362, inf
        %v1561 = vsel %vm1560, %v1362, %v1559
        %vm1562 = vcmp.eq.f32.partialorder %v1362, 0.0
        %v1563 = vand.u32 %v1362, 2147483648
        %v1564 = vsel %vm1562, %v1563, %v1561
        %v1565 = vrsqrt.pop %v1363
        %v1566 = vmul.f32 %v1363, %v1565
        %vm1567 = vcmp.eq.f32.partialorder %v1363, inf
        %v1568 = vsel %vm1567, %v1363, %v1566
        %vm1569 = vcmp.eq.f32.partialorder %v1363, 0.0
        %v1570 = vand.u32 %v1363, 2147483648
        %v1571 = vsel %vm1569, %v1570, %v1568
        %v1572 = vrsqrt.pop %v1364
        %v1573 = vmul.f32 %v1364, %v1572
        %vm1574 = vcmp.eq.f32.partialorder %v1364, inf
        %v1575 = vsel %vm1574, %v1364, %v1573
        %vm1576 = vcmp.eq.f32.partialorder %v1364, 0.0
        %v1577 = vand.u32 %v1364, 2147483648
        %v1578 = vsel %vm1576, %v1577, %v1575
        %v1579 = vrsqrt.pop %v1365
        %v1580 = vmul.f32 %v1365, %v1579
        %vm1581 = vcmp.eq.f32.partialorder %v1365, inf
        %v1582 = vsel %vm1581, %v1365, %v1580
        %vm1583 = vcmp.eq.f32.partialorder %v1365, 0.0
        %v1584 = vand.u32 %v1365, 2147483648
        %v1585 = vsel %vm1583, %v1584, %v1582
        %v1586 = vrsqrt.pop %v1366
        %v1587 = vmul.f32 %v1366, %v1586
        %vm1588 = vcmp.eq.f32.partialorder %v1366, inf
        %v1589 = vsel %vm1588, %v1366, %v1587
        %vm1590 = vcmp.eq.f32.partialorder %v1366, 0.0
        %v1591 = vand.u32 %v1366, 2147483648
        %v1592 = vsel %vm1590, %v1591, %v1589
        %v1593 = vrsqrt.pop %v1367
        %v1594 = vmul.f32 %v1367, %v1593
        %vm1595 = vcmp.eq.f32.partialorder %v1367, inf
        %v1596 = vsel %vm1595, %v1367, %v1594
        %vm1597 = vcmp.eq.f32.partialorder %v1367, 0.0
        %v1598 = vand.u32 %v1367, 2147483648
        %v1599 = vsel %vm1597, %v1598, %v1596
        %v1600 = vrsqrt.pop %v1368
        %v1601 = vmul.f32 %v1368, %v1600
        %vm1602 = vcmp.eq.f32.partialorder %v1368, inf
        %v1603 = vsel %vm1602, %v1368, %v1601
        %vm1604 = vcmp.eq.f32.partialorder %v1368, 0.0
        %v1605 = vand.u32 %v1368, 2147483648
        %v1606 = vsel %vm1604, %v1605, %v1603
        %v1607 = vrsqrt.pop %v1369
        %v1608 = vmul.f32 %v1369, %v1607
        %vm1609 = vcmp.eq.f32.partialorder %v1369, inf
        %v1610 = vsel %vm1609, %v1369, %v1608
        %vm1611 = vcmp.eq.f32.partialorder %v1369, 0.0
        %v1612 = vand.u32 %v1369, 2147483648
        %v1613 = vsel %vm1611, %v1612, %v1610
        %v1614 = vrsqrt.pop %v1370
        %v1615 = vmul.f32 %v1370, %v1614
        %vm1616 = vcmp.eq.f32.partialorder %v1370, inf
        %v1617 = vsel %vm1616, %v1370, %v1615
        %vm1618 = vcmp.eq.f32.partialorder %v1370, 0.0
        %v1619 = vand.u32 %v1370, 2147483648
        %v1620 = vsel %vm1618, %v1619, %v1617
        %v1621 = vrsqrt.pop %v1371
        %v1622 = vmul.f32 %v1371, %v1621
        %vm1623 = vcmp.eq.f32.partialorder %v1371, inf
        %v1624 = vsel %vm1623, %v1371, %v1622
        %vm1625 = vcmp.eq.f32.partialorder %v1371, 0.0
        %v1626 = vand.u32 %v1371, 2147483648
        %v1627 = vsel %vm1625, %v1626, %v1624
        %v1628 = vrsqrt.pop %v1372
        %v1629 = vmul.f32 %v1372, %v1628
        %vm1630 = vcmp.eq.f32.partialorder %v1372, inf
        %v1631 = vsel %vm1630, %v1372, %v1629
        %vm1632 = vcmp.eq.f32.partialorder %v1372, 0.0
        %v1633 = vand.u32 %v1372, 2147483648
        %v1634 = vsel %vm1632, %v1633, %v1631
        %v1635 = vrsqrt.pop %v1373
        %v1636 = vmul.f32 %v1373, %v1635
        %vm1637 = vcmp.eq.f32.partialorder %v1373, inf
        %v1638 = vsel %vm1637, %v1373, %v1636
        %vm1639 = vcmp.eq.f32.partialorder %v1373, 0.0
        %v1640 = vand.u32 %v1373, 2147483648
        %v1641 = vsel %vm1639, %v1640, %v1638
        %v1642 = vrsqrt.pop %v1374
        %v1643 = vmul.f32 %v1374, %v1642
        %vm1644 = vcmp.eq.f32.partialorder %v1374, inf
        %v1645 = vsel %vm1644, %v1374, %v1643
        %vm1646 = vcmp.eq.f32.partialorder %v1374, 0.0
        %v1647 = vand.u32 %v1374, 2147483648
        %v1648 = vsel %vm1646, %v1647, %v1645
        %v1649 = vrsqrt.pop %v1375
        %v1650 = vmul.f32 %v1375, %v1649
        %vm1651 = vcmp.eq.f32.partialorder %v1375, inf
        %v1652 = vsel %vm1651, %v1375, %v1650
        %vm1653 = vcmp.eq.f32.partialorder %v1375, 0.0
        %v1654 = vand.u32 %v1375, 2147483648
        %v1655 = vsel %vm1653, %v1654, %v1652
        %v1656 = vrsqrt.pop %v1376
        %v1657 = vmul.f32 %v1376, %v1656
        %vm1658 = vcmp.eq.f32.partialorder %v1376, inf
        %v1659 = vsel %vm1658, %v1376, %v1657
        %vm1660 = vcmp.eq.f32.partialorder %v1376, 0.0
        %v1661 = vand.u32 %v1376, 2147483648
        %v1662 = vsel %vm1660, %v1661, %v1659
        %v1663 = vrsqrt.pop %v1377
        %v1664 = vmul.f32 %v1377, %v1663
        %vm1665 = vcmp.eq.f32.partialorder %v1377, inf
        %v1666 = vsel %vm1665, %v1377, %v1664
        %vm1667 = vcmp.eq.f32.partialorder %v1377, 0.0
        %v1668 = vand.u32 %v1377, 2147483648
        %v1669 = vsel %vm1667, %v1668, %v1666
        %v1670 = vrsqrt.pop %v1378
        %v1671 = vmul.f32 %v1378, %v1670
        %vm1672 = vcmp.eq.f32.partialorder %v1378, inf
        %v1673 = vsel %vm1672, %v1378, %v1671
        %vm1674 = vcmp.eq.f32.partialorder %v1378, 0.0
        %v1675 = vand.u32 %v1378, 2147483648
        %v1676 = vsel %vm1674, %v1675, %v1673
        %v1677 = vrsqrt.pop %v1379
        %v1678 = vmul.f32 %v1379, %v1677
        %vm1679 = vcmp.eq.f32.partialorder %v1379, inf
        %v1680 = vsel %vm1679, %v1379, %v1678
        %vm1681 = vcmp.eq.f32.partialorder %v1379, 0.0
        %v1682 = vand.u32 %v1379, 2147483648
        %v1683 = vsel %vm1681, %v1682, %v1680
        %v1684 = vrsqrt.pop %v1380
        %v1685 = vmul.f32 %v1380, %v1684
        %vm1686 = vcmp.eq.f32.partialorder %v1380, inf
        %v1687 = vsel %vm1686, %v1380, %v1685
        %vm1688 = vcmp.eq.f32.partialorder %v1380, 0.0
        %v1689 = vand.u32 %v1380, 2147483648
        %v1690 = vsel %vm1688, %v1689, %v1687
        %v1691 = vrsqrt.pop %v1381
        %v1692 = vmul.f32 %v1381, %v1691
        %vm1693 = vcmp.eq.f32.partialorder %v1381, inf
        %v1694 = vsel %vm1693, %v1381, %v1692
        %vm1695 = vcmp.eq.f32.partialorder %v1381, 0.0
        %v1696 = vand.u32 %v1381, 2147483648
        %v1697 = vsel %vm1695, %v1696, %v1694
        %v1698 = vrsqrt.pop %v1382
        %v1699 = vmul.f32 %v1382, %v1698
        %vm1700 = vcmp.eq.f32.partialorder %v1382, inf
        %v1701 = vsel %vm1700, %v1382, %v1699
        %vm1702 = vcmp.eq.f32.partialorder %v1382, 0.0
        %v1703 = vand.u32 %v1382, 2147483648
        %v1704 = vsel %vm1702, %v1703, %v1701
        %v1705 = vrsqrt.pop %v1383
        %v1706 = vmul.f32 %v1383, %v1705
        %vm1707 = vcmp.eq.f32.partialorder %v1383, inf
        %v1708 = vsel %vm1707, %v1383, %v1706
        %vm1709 = vcmp.eq.f32.partialorder %v1383, 0.0
        %v1710 = vand.u32 %v1383, 2147483648
        %v1711 = vsel %vm1709, %v1710, %v1708
        %v1712 = vrsqrt.pop %v1384
        %v1713 = vmul.f32 %v1384, %v1712
        %vm1714 = vcmp.eq.f32.partialorder %v1384, inf
        %v1715 = vsel %vm1714, %v1384, %v1713
        %vm1716 = vcmp.eq.f32.partialorder %v1384, 0.0
        %v1717 = vand.u32 %v1384, 2147483648
        %v1718 = vsel %vm1716, %v1717, %v1715
        %v1719 = vrsqrt.pop %v1385
        %v1720 = vmul.f32 %v1385, %v1719
        %vm1721 = vcmp.eq.f32.partialorder %v1385, inf
        %v1722 = vsel %vm1721, %v1385, %v1720
        %vm1723 = vcmp.eq.f32.partialorder %v1385, 0.0
        %v1724 = vand.u32 %v1385, 2147483648
        %v1725 = vsel %vm1723, %v1724, %v1722
        %v1726 = vrsqrt.pop %v1386
        %v1727 = vmul.f32 %v1386, %v1726
        %vm1728 = vcmp.eq.f32.partialorder %v1386, inf
        %v1729 = vsel %vm1728, %v1386, %v1727
        %vm1730 = vcmp.eq.f32.partialorder %v1386, 0.0
        %v1731 = vand.u32 %v1386, 2147483648
        %v1732 = vsel %vm1730, %v1731, %v1729
        %v1733 = vrsqrt.pop %v1387
        %v1734 = vmul.f32 %v1387, %v1733
        %vm1735 = vcmp.eq.f32.partialorder %v1387, inf
        %v1736 = vsel %vm1735, %v1387, %v1734
        %vm1737 = vcmp.eq.f32.partialorder %v1387, 0.0
        %v1738 = vand.u32 %v1387, 2147483648
        %v1739 = vsel %vm1737, %v1738, %v1736
        %v1740 = vrsqrt.pop %v1388
        %v1741 = vmul.f32 %v1388, %v1740
        %vm1742 = vcmp.eq.f32.partialorder %v1388, inf
        %v1743 = vsel %vm1742, %v1388, %v1741
        %vm1744 = vcmp.eq.f32.partialorder %v1388, 0.0
        %v1745 = vand.u32 %v1388, 2147483648
        %v1746 = vsel %vm1744, %v1745, %v1743
        %v1747 = vrsqrt.pop %v1389
        %v1748 = vmul.f32 %v1389, %v1747
        %vm1749 = vcmp.eq.f32.partialorder %v1389, inf
        %v1750 = vsel %vm1749, %v1389, %v1748
        %vm1751 = vcmp.eq.f32.partialorder %v1389, 0.0
        %v1752 = vand.u32 %v1389, 2147483648
        %v1753 = vsel %vm1751, %v1752, %v1750
        %v1754 = vrsqrt.pop %v1390
        %v1755 = vmul.f32 %v1390, %v1754
        %vm1756 = vcmp.eq.f32.partialorder %v1390, inf
        %v1757 = vsel %vm1756, %v1390, %v1755
        %vm1758 = vcmp.eq.f32.partialorder %v1390, 0.0
        %v1759 = vand.u32 %v1390, 2147483648
        %v1760 = vsel %vm1758, %v1759, %v1757
        %v1761 = vrsqrt.pop %v1391
        %v1762 = vmul.f32 %v1391, %v1761
        %vm1763 = vcmp.eq.f32.partialorder %v1391, inf
        %v1764 = vsel %vm1763, %v1391, %v1762
        %vm1765 = vcmp.eq.f32.partialorder %v1391, 0.0
        %v1766 = vand.u32 %v1391, 2147483648
        %v1767 = vsel %vm1765, %v1766, %v1764
        %v1768 = vrsqrt.pop %v1392
        %v1769 = vmul.f32 %v1392, %v1768
        %vm1770 = vcmp.eq.f32.partialorder %v1392, inf
        %v1771 = vsel %vm1770, %v1392, %v1769
        %vm1772 = vcmp.eq.f32.partialorder %v1392, 0.0
        %v1773 = vand.u32 %v1392, 2147483648
        %v1774 = vsel %vm1772, %v1773, %v1771
        %v1775 = vrsqrt.pop %v1393
        %v1776 = vmul.f32 %v1393, %v1775
        %vm1777 = vcmp.eq.f32.partialorder %v1393, inf
        %v1778 = vsel %vm1777, %v1393, %v1776
        %vm1779 = vcmp.eq.f32.partialorder %v1393, 0.0
        %v1780 = vand.u32 %v1393, 2147483648
        %v1781 = vsel %vm1779, %v1780, %v1778
        %v1782 = vrsqrt.pop %v1394
        %v1783 = vmul.f32 %v1394, %v1782
        %vm1784 = vcmp.eq.f32.partialorder %v1394, inf
        %v1785 = vsel %vm1784, %v1394, %v1783
        %vm1786 = vcmp.eq.f32.partialorder %v1394, 0.0
        %v1787 = vand.u32 %v1394, 2147483648
        %v1788 = vsel %vm1786, %v1787, %v1785
        %v1789 = vrsqrt.pop %v1395
        %v1790 = vmul.f32 %v1395, %v1789
        %vm1791 = vcmp.eq.f32.partialorder %v1395, inf
        %v1792 = vsel %vm1791, %v1395, %v1790
        %vm1793 = vcmp.eq.f32.partialorder %v1395, 0.0
        %v1794 = vand.u32 %v1395, 2147483648
        %v1795 = vsel %vm1793, %v1794, %v1792
        %v1796 = vrsqrt.pop %v1396
        %v1797 = vmul.f32 %v1396, %v1796
        %vm1798 = vcmp.eq.f32.partialorder %v1396, inf
        %v1799 = vsel %vm1798, %v1396, %v1797
        %vm1800 = vcmp.eq.f32.partialorder %v1396, 0.0
        %v1801 = vand.u32 %v1396, 2147483648
        %v1802 = vsel %vm1800, %v1801, %v1799
        %v1803 = vrsqrt.pop %v1397
        %v1804 = vmul.f32 %v1397, %v1803
        %vm1805 = vcmp.eq.f32.partialorder %v1397, inf
        %v1806 = vsel %vm1805, %v1397, %v1804
        %vm1807 = vcmp.eq.f32.partialorder %v1397, 0.0
        %v1808 = vand.u32 %v1397, 2147483648
        %v1809 = vsel %vm1807, %v1808, %v1806
        %v1810 = vrsqrt.pop %v1398
        %v1811 = vmul.f32 %v1398, %v1810
        %vm1812 = vcmp.eq.f32.partialorder %v1398, inf
        %v1813 = vsel %vm1812, %v1398, %v1811
        %vm1814 = vcmp.eq.f32.partialorder %v1398, 0.0
        %v1815 = vand.u32 %v1398, 2147483648
        %v1816 = vsel %vm1814, %v1815, %v1813
        %v1817 = vrsqrt.pop %v1399
        %v1818 = vmul.f32 %v1399, %v1817
        %vm1819 = vcmp.eq.f32.partialorder %v1399, inf
        %v1820 = vsel %vm1819, %v1399, %v1818
        %vm1821 = vcmp.eq.f32.partialorder %v1399, 0.0
        %v1822 = vand.u32 %v1399, 2147483648
        %v1823 = vsel %vm1821, %v1822, %v1820
        %v1824 = vrsqrt.pop %v1400
        %v1825 = vmul.f32 %v1400, %v1824
        %vm1826 = vcmp.eq.f32.partialorder %v1400, inf
        %v1827 = vsel %vm1826, %v1400, %v1825
        %vm1828 = vcmp.eq.f32.partialorder %v1400, 0.0
        %v1829 = vand.u32 %v1400, 2147483648
        %v1830 = vsel %vm1828, %v1829, %v1827
        %v1831 = vrsqrt.pop %v1401
        %v1832 = vmul.f32 %v1401, %v1831
        %vm1833 = vcmp.eq.f32.partialorder %v1401, inf
        %v1834 = vsel %vm1833, %v1401, %v1832
        %vm1835 = vcmp.eq.f32.partialorder %v1401, 0.0
        %v1836 = vand.u32 %v1401, 2147483648
        %v1837 = vsel %vm1835, %v1836, %v1834
        %v1838 = vrsqrt.pop %v1402
        %v1839 = vmul.f32 %v1402, %v1838
        %vm1840 = vcmp.eq.f32.partialorder %v1402, inf
        %v1841 = vsel %vm1840, %v1402, %v1839
        %vm1842 = vcmp.eq.f32.partialorder %v1402, 0.0
        %v1843 = vand.u32 %v1402, 2147483648
        %v1844 = vsel %vm1842, %v1843, %v1841
        %v1845 = vrsqrt.pop %v1403
        %v1846 = vmul.f32 %v1403, %v1845
        %vm1847 = vcmp.eq.f32.partialorder %v1403, inf
        %v1848 = vsel %vm1847, %v1403, %v1846
        %vm1849 = vcmp.eq.f32.partialorder %v1403, 0.0
        %v1850 = vand.u32 %v1403, 2147483648
        %v1851 = vsel %vm1849, %v1850, %v1848
        %1852 = vst [vmem:[%s341] sm:$0xff] %v1410
        %1853 = vst [vmem:[%s341 + $0x8] sm:$0xff] %v1417
        %1854 = vst [vmem:[%s341 + $0x10] sm:$0xff] %v1424
        %1855 = vst [vmem:[%s341 + $0x18] sm:$0xff] %v1431
        %1856 = vst [vmem:[%s341 + $0x20] sm:$0xff] %v1438
        %1857 = vst [vmem:[%s341 + $0x28] sm:$0xff] %v1445
        %1858 = vst [vmem:[%s341 + $0x30] sm:$0xff] %v1452
        %1859 = vst [vmem:[%s341 + $0x38] sm:$0xff] %v1459
        %1860 = vst [vmem:[%s341 + $0x40] sm:$0xff] %v1466
        %1861 = vst [vmem:[%s341 + $0x48] sm:$0xff] %v1473
        %1862 = vst [vmem:[%s341 + $0x50] sm:$0xff] %v1480
        %1863 = vst [vmem:[%s341 + $0x58] sm:$0xff] %v1487
        %1864 = vst [vmem:[%s341 + $0x60] sm:$0xff] %v1494
        %1865 = vst [vmem:[%s341 + $0x68] sm:$0xff] %v1501
        %1866 = vst [vmem:[%s341 + $0x70] sm:$0xff] %v1508
        %1867 = vst [vmem:[%s341 + $0x78] sm:$0xff] %v1515
        %1868 = vst [vmem:[%s341 + $0x80] sm:$0xff] %v1522
        %1869 = vst [vmem:[%s341 + $0x88] sm:$0xff] %v1529
        %1870 = vst [vmem:[%s341 + $0x90] sm:$0xff] %v1536
        %1871 = vst [vmem:[%s341 + $0x98] sm:$0xff] %v1543
        %1872 = vst [vmem:[%s341 + $0xa0] sm:$0xff] %v1550
        %1873 = vst [vmem:[%s341 + $0xa8] sm:$0xff] %v1557
        %1874 = vst [vmem:[%s341 + $0xb0] sm:$0xff] %v1564
        %1875 = vst [vmem:[%s341 + $0xb8] sm:$0xff] %v1571
        %1876 = vst [vmem:[%s341 + $0xc0] sm:$0xff] %v1578
        %1877 = vst [vmem:[%s341 + $0xc8] sm:$0xff] %v1585
        %1878 = vst [vmem:[%s341 + $0xd0] sm:$0xff] %v1592
        %1879 = vst [vmem:[%s341 + $0xd8] sm:$0xff] %v1599
        %1880 = vst [vmem:[%s341 + $0xe0] sm:$0xff] %v1606
        %1881 = vst [vmem:[%s341 + $0xe8] sm:$0xff] %v1613
        %1882 = vst [vmem:[%s341 + $0xf0] sm:$0xff] %v1620
        %1883 = vst [vmem:[%s341 + $0xf8] sm:$0xff] %v1627
        %1884 = vst [vmem:[%s341 + $0x100] sm:$0xff] %v1634
        %1885 = vst [vmem:[%s341 + $0x108] sm:$0xff] %v1641
        %1886 = vst [vmem:[%s341 + $0x110] sm:$0xff] %v1648
        %1887 = vst [vmem:[%s341 + $0x118] sm:$0xff] %v1655
        %1888 = vst [vmem:[%s341 + $0x120] sm:$0xff] %v1662
        %1889 = vst [vmem:[%s341 + $0x128] sm:$0xff] %v1669
        %1890 = vst [vmem:[%s341 + $0x130] sm:$0xff] %v1676
        %1891 = vst [vmem:[%s341 + $0x138] sm:$0xff] %v1683
        %1892 = vst [vmem:[%s341 + $0x140] sm:$0xff] %v1690
        %1893 = vst [vmem:[%s341 + $0x148] sm:$0xff] %v1697
        %1894 = vst [vmem:[%s341 + $0x150] sm:$0xff] %v1704
        %1895 = vst [vmem:[%s341 + $0x158] sm:$0xff] %v1711
        %1896 = vst [vmem:[%s341 + $0x160] sm:$0xff] %v1718
        %1897 = vst [vmem:[%s341 + $0x168] sm:$0xff] %v1725
        %1898 = vst [vmem:[%s341 + $0x170] sm:$0xff] %v1732
        %1899 = vst [vmem:[%s341 + $0x178] sm:$0xff] %v1739
        %1900 = vst [vmem:[%s341 + $0x180] sm:$0xff] %v1746
        %1901 = vst [vmem:[%s341 + $0x188] sm:$0xff] %v1753
        %1902 = vst [vmem:[%s341 + $0x190] sm:$0xff] %v1760
        %1903 = vst [vmem:[%s341 + $0x198] sm:$0xff] %v1767
        %1904 = vst [vmem:[%s341 + $0x1a0] sm:$0xff] %v1774
        %1905 = vst [vmem:[%s341 + $0x1a8] sm:$0xff] %v1781
        %1906 = vst [vmem:[%s341 + $0x1b0] sm:$0xff] %v1788
        %1907 = vst [vmem:[%s341 + $0x1b8] sm:$0xff] %v1795
        %1908 = vst [vmem:[%s341 + $0x1c0] sm:$0xff] %v1802
        %1909 = vst [vmem:[%s341 + $0x1c8] sm:$0xff] %v1809
        %1910 = vst [vmem:[%s341 + $0x1d0] sm:$0xff] %v1816
        %1911 = vst [vmem:[%s341 + $0x1d8] sm:$0xff] %v1823
        %1912 = vst [vmem:[%s341 + $0x1e0] sm:$0xff] %v1830
        %1913 = vst [vmem:[%s341 + $0x1e8] sm:$0xff] %v1837
        %1914 = vst [vmem:[%s341 + $0x1f0] sm:$0xff] %v1844
        %1915 = vst [vmem:[%s341 + $0x1f8] sm:$0xff] %v1851
        %s1916 = sand.u32 %s189, 1
        %s1917 = scalar_lea.sflag [#allocation4], %s1916
        %s1918 = sand.u32 %s189, 1
        %s1919 = smul.addr %s1918, 512
        %s1920 = scalar_lea.vmem [#allocation9], %s1919
        // Predicated region
        $region53: #{tpu_custom_call.1} parent=39 // pred_check
          %p1921 = pneg %p199
        $region54: #{tpu_custom_call.1} parent=39 // pred_check_branch
          %1923 = sbr.rel (%p1921) target = $region56
        $region55: #{tpu_custom_call.1} parent=39 // pred_region
          %s1924 = smul.u32 32, %s32
          %s1925 = smul.u32 2, %s33
          %s1927 = ssub.s32 8192, 8192
          %1928 = vsyncadd %s1917, %s1927
          %s1929 = smul.addr %s1924, 2
          %s1930 = sadd.s32 %s1925, %s1929
          %s1931 = smul.addr %s31, 64
          %s1932 = sadd.s32 %s1930, %s1931
          %s1933 = smul.addr %s30, 256
          %s1934 = sadd.s32 %s1932, %s1933
          %s1935 = smul.addr %s1934, 128
          %s1936 = scalar_lea.hbm %s5, %s1935
          %s1937 = sshll.u32 %s1920, 4
          %s1938 = int_to_ptr.vmem [resolvable:$true] %s1937
          %1943 = dma.vmem_to_hbm [thread:$0]  %s1938, 8192, %s1936, %s1917, 256, 256, 16
        $region56: #{tpu_custom_call.1} parent=39 // pred_fallthru
          _
      $region40: #{tpu_custom_call.1} parent=5 // pred_fallthru
        _
      %p1944 = scmp.le.s32.totalorder 2, %s19
      // Predicated region
      $region57: #{tpu_custom_call.1} parent=5 // pred_check
        %p1945 = pneg %p1944
      $region58: #{tpu_custom_call.1} parent=5 // pred_check_branch
        %1947 = sbr.rel (%p1945) target = $region60
      $region59: #{tpu_custom_call.1} parent=5 // pred_region
        %s1948 = ssub.s32 %s19, 2
        // Predicated region
        $region61: #{tpu_custom_call.1} parent=59 // pred_check
          %p1949 = pneg %p205
        $region62: #{tpu_custom_call.1} parent=59 // pred_check_branch
          %1951 = sbr.rel (%p1949) target = $region64
        $region63: #{tpu_custom_call.1} parent=59 // pred_region
          %s1952 = sand.u32 %s190, 1
          %s1953 = scalar_lea.sflag [#allocation4], %s1952
          %s1954 = sand.u32 %s190, 1
          %s1955 = smul.addr %s1954, 512
          %s1956 = scalar_lea.vmem [#allocation9], %s1955
          %1957 = dma.done %s1953, 8192
        $region64: #{tpu_custom_call.1} parent=59 // pred_fallthru
          _
      $region60: #{tpu_custom_call.1} parent=5 // pred_fallthru
        _
    $region6: #{tpu_custom_call.1} parent=1 // loop_footer
      %s23 = sadd.s32 1, %s19
    $region7: #{tpu_custom_call.1} parent=1 // loop_footer_branch
      %18 = sbr.rel target = $region3
    $region8: #{tpu_custom_call.1} parent=1 // loop_exit
      _
    %1958 = vsyncpa [#allocation3], 1
    %s1959 = scalar_lea.sflag [#allocation3], 1
    %1960 = vsyncpa %s1959, 1
    %1961 = vsyncpa [#allocation8], 1
    %1962 = vsyncpa [#allocation4], 1
    %s1963 = scalar_lea.sflag [#allocation4], 1
    %1964 = vsyncpa %s1963, 1
    %1965 = vsyncpa [#allocation5], 1
    %s1966 = scalar_lea.sflag [#allocation5], 1
    %1967 = vsyncpa %s1966, 1

</llo_original>
